<compile_context>
chip_gen: v7x
topology: tpu7x:2x2x1
jax: 0.10.0
libtpu: 0.0.40
codegen_flags: <defaults>
</compile_context>

<pallas_src>
import numpy as np
import jax
import jax.numpy as jnp
from jax.experimental import pallas as pl
from jax.experimental.pallas import tpu as pltpu


# ---------------------------------------------------------------------------
# Fused kernel: all metapaths of one node type + inter-metapath attention + fc_<ntype>.
# ---------------------------------------------------------------------------
def _make_fused_kernel(P, T, in_dim, num_heads):
    D, H = in_dim, num_heads
    HD = D * H
    bf = jnp.bfloat16

    def kernel(edata_ref, wrnn_ref, brnn_ref, bdattn_ref, onehot_ref,
               w1_ref, b1_ref, w2t_ref, wfc_ref, bfc_ref,
               logits_ref, h_ref, cat_sc):
        elus = []
        blog = []
        # P is a small compile-time constant -> fully unrolled inside one grid step.
        for p in range(P):
            # ---- intra-metapath (MAGNN_metapath_specific, rnn_type='linear') ----
            hidden = jnp.dot(edata_ref[0, p], wrnn_ref[0, p],
                             preferred_element_type=jnp.float32) + brnn_ref[0, p]  # (E,HD) f32

            # lane-dense per-head scores via the precomputed block-diagonal attn selector:
            # scores[e, h*D+d] = sum_{d'} hidden[e, h*D+d'] * attn[h, d']   (same value over
            # each head's D lanes) -> one MXU pass replaces mul + head-reduce + broadcast.
            scores = jnp.dot(hidden.astype(bf), bdattn_ref[0, p],
                             preferred_element_type=jnp.float32)            # (E, HD)
            scores = jnp.where(scores > 0, scores, 0.01 * scores)           # LeakyReLU(0.01)
            # subtracting a per-head constant is exact for grouped edge_softmax
            scores = scores - jnp.max(scores, axis=0, keepdims=True)
            exp_b = jnp.exp(scores)                                         # (E, HD) f32

            # merged numerator / denominator one-hot segment-sum: two lane-aligned stores
            # into a bf16 scratch (no concatenate temp) + ONE (T,E)@(E,2HD) MXU call.
            cat_sc[:, :HD] = (hidden * exp_b).astype(bf)
            cat_sc[:, HD:] = exp_b.astype(bf)
            agg = jnp.dot(onehot_ref[0, p], cat_sc[...],
                          preferred_element_type=jnp.float32)               # (T, 2*HD)
            numer = agg[:, :HD]
            denom = jnp.where(agg[:, HD:] <= 0.0, 1.0, agg[:, HD:])         # 0-in-degree guard
            ret = numer * pl.reciprocal(denom, approx=True)                 # edge-softmax agg
            elu = jnp.where(ret > 0, ret, jnp.exp(jnp.minimum(ret, 0.0)) - 1.0)   # F.elu
            elus.append(elu)

            # ---- inter-metapath attention logit for this metapath ----
            fc1 = jnp.tanh(jnp.dot(elu.astype(bf), w1_ref[0],
                                   preferred_element_type=jnp.float32)
                           + b1_ref[0])                                     # (T, A)
            mean_p = jnp.mean(fc1, axis=0, keepdims=True)                   # (1, A)
            blog.append(jnp.sum(mean_p * w2t_ref[0], axis=1, keepdims=True))  # (1, 1)

        # ---- softmax over metapaths + combine + fc_<ntype> ----
        m = blog[0]
        for q in range(1, P):
            m = jnp.maximum(m, blog[q])
        exps = [jnp.exp(b - m) for b in blog]
        den = exps[0]
        for q in range(1, P):
            den = den + exps[q]
        h = (exps[0] / den) * elus[0]
        for q in range(1, P):
            h = h + (exps[q] / den) * elus[q]
        h_ref[0] = h
        logits_ref[0] = jnp.dot(h.astype(bf), wfc_ref[0],
                                preferred_element_type=jnp.float32) + bfc_ref[0]

    return kernel


def magnn_lp_forward(edata_mean_all, w_rnn_all, b_rnn_all, bd_attn_all, onehot_all,
                     w1_all, b1_all, w2t_all, wfc_pad_all, bfc_pad_all,
                     *, num_ntypes, num_metapaths, in_dim, num_heads):
    NT, P = num_ntypes, num_metapaths
    HD = in_dim * num_heads
    T = onehot_all.shape[2]
    E = onehot_all.shape[3]
    OUTP = wfc_pad_all.shape[2]

    def mp_spec(arr):   # per-metapath operand, shape (NT, P, ...); whole P block per nt step
        return pl.BlockSpec((1,) + arr.shape[1:], lambda nt: (nt, 0, 0, 0))

    def nt_spec(arr):   # per-node-type operand, VMEM-resident for the whole nt step
        return pl.BlockSpec((1,) + arr.shape[1:], lambda nt: (nt, 0, 0))

    kernel = _make_fused_kernel(P, T, in_dim, num_heads)
    logits_pad, h = pl.pallas_call(
        kernel,
        out_shape=(jax.ShapeDtypeStruct((NT, T, OUTP), jnp.float32),
                   jax.ShapeDtypeStruct((NT, T, HD), jnp.float32)),
        grid_spec=pltpu.PrefetchScalarGridSpec(
            num_scalar_prefetch=0,
            grid=(NT,),
            in_specs=[mp_spec(edata_mean_all), mp_spec(w_rnn_all),
                      mp_spec(b_rnn_all), mp_spec(bd_attn_all), mp_spec(onehot_all),
                      nt_spec(w1_all), nt_spec(b1_all), nt_spec(w2t_all),
                      nt_spec(wfc_pad_all), nt_spec(bfc_pad_all)],
            out_specs=(pl.BlockSpec((1, T, OUTP), lambda nt: (nt, 0, 0)),
                       pl.BlockSpec((1, T, HD), lambda nt: (nt, 0, 0))),
            scratch_shapes=[pltpu.VMEM((E, 2 * HD), jnp.bfloat16)]),
        compiler_params=pltpu.CompilerParams(
            # NT=3 splits 2:1 across v7x's two TensorCores; fine at these shapes.
            # TODO(synk): at real graph scale add an E-tile grid axis (dst-sorted edges +
            # scalar-prefetched group offsets) and parallelize over it instead.
            dimension_semantics=("parallel",),
            vmem_limit_bytes=32 * 1024 * 1024),
    )(edata_mean_all, w_rnn_all, b_rnn_all, bd_attn_all, onehot_all,
      w1_all, b1_all, w2t_all, wfc_pad_all, bfc_pad_all)
    return logits_pad, h


# ---------------------------------------------------------------------------
# Pure-JAX reference (same math) used only to validate the kernel.
# ---------------------------------------------------------------------------
def _ref_metapath(edata_mean, w_rnn, b_rnn, attn_flat, onehot, H, D):
    hidden = edata_mean @ w_rnn + b_rnn
    eft = hidden.reshape(-1, H, D)
    attn = attn_flat.reshape(1, H, D)
    a = (eft * attn).sum(-1)
    a = jnp.where(a > 0, a, 0.01 * a)
    a = a - a.max(axis=0, keepdims=True)
    ea = jnp.exp(a)
    numer = jnp.einsum('te,ehd->thd', onehot, eft * ea[:, :, None])
    denom = onehot @ ea
    ret = (numer / denom[:, :, None]).reshape(onehot.shape[0], -1)
    return jnp.where(ret > 0, ret, jnp.exp(jnp.minimum(ret, 0.0)) - 1.0)


def _ref_ntype(outs, w1, b1, w2, wfc, bfc):
    betas = []
    for p in range(outs.shape[0]):
        fc1 = jnp.tanh(outs[p] @ w1 + b1)
        betas.append((fc1.mean(axis=0, keepdims=True) @ w2)[0, 0])
    beta = jax.nn.softmax(jnp.stack(betas))
    h = jnp.einsum('p,ptd->td', beta, outs)
    return h @ wfc + bfc, h


# ---------------------------------------------------------------------------
if __name__ == "__main__":
    D, H, A, OUT = 32, 4, 16, 8           # in_dim, num_heads, attn_vec_dim, out_dim
    HD = D * H                            # 128 -> lane-dense feature axis
    NT, P = 3, 2                          # node types (microbe/disease/metabolite) x metapaths
    # TODO(synk): ragged num_metapaths_list (different P per node type) not handled; pad to max P.
    T, E, L, N = 8, 32, 3, 40             # targets / edges per metapath / path length / nodes
    OUTP = 128                            # fc output padded to a full lane width

    key = jax.random.PRNGKey(0)
    _keys = iter(jax.random.split(key, 256))
    nxt = lambda: next(_keys)

    def xavier(shape, fan_in, fan_out, gain=1.414):
        std = gain * np.sqrt(2.0 / (fan_in + fan_out))
        return jax.random.normal(nxt(), shape, jnp.float32) * std

    features = jax.random.normal(nxt(), (N, D), jnp.float32)

    # grid-invariant block-diagonal head mask (used to build BD_attn on the host)
    jj = np.arange(HD)
    blk_mask = jnp.asarray((jj[:, None] // D == jj[None, :] // D).astype(np.float32))  # (HD,HD)

    edata_list, onehot_list = [], []
    wrnn_list, brnn_list, attn_list, bdattn_list = [], [], [], []
    w1_list, b1_list, w2_list, wfc_list, bfc_list = [], [], [], [], []

    for nt in range(NT):
        for p in range(P):
            w_rnn = xavier((D, HD), D, HD)                       # nn.Linear(D, H*D).weight.T
            b_rnn = jax.random.normal(nxt(), (1, HD), jnp.float32) * 0.01
            attn = xavier((1, HD), D, H)                         # attn (1,H,D), head-major flat
            idx = jax.random.randint(nxt(), (E, L), 0, N)        # edge_metapath_indices
            dst_rest = jax.random.randint(nxt(), (E - T,), 0, T)
            dst = jnp.concatenate([jnp.arange(T), dst_rest])     # each edge's dst target node
            # XLA glue: embedding gather + mean over metapath positions (rnn_type='linear').
            # TODO(synk): at real graph scale, move this gather in-kernel via scalar-prefetched
            # indices + manual make_async_copy row gather, tiled over E.
            edata_mean = features[idx].mean(axis=1)              # (E, D)
            # XLA glue: dense dst->target assignment replacing the DGL graph structure.
            # TODO(synk): dense (T,E) one-hot segment-sum does not scale to large E; replace
            # with an E-tiled grid axis + VMEM accumulator over dst-sorted edges.
            onehot = (jnp.arange(T)[:, None] == dst[None, :]).astype(jnp.float32)  # (T, E)
            # block-diagonal attn selector: BD[j,k] = attn_flat[j] if j//D == k//D else 0
            bd_attn = attn.reshape(HD, 1) * blk_mask             # (HD, HD)

            edata_list.append(edata_mean)
            onehot_list.append(onehot)
            wrnn_list.append(w_rnn)
            brnn_list.append(b_rnn)
            attn_list.append(attn)
            bdattn_list.append(bd_attn)

        w1_list.append(xavier((HD, A), HD, A))
        b1_list.append(jax.random.normal(nxt(), (1, A), jnp.float32) * 0.01)
        w2_list.append(xavier((A, 1), A, 1))
        wfc_list.append(xavier((HD, OUT), HD, OUT))
        bfc_list.append(jax.random.normal(nxt(), (1, OUT), jnp.float32) * 0.01)

    bf = jnp.bfloat16
    # stacked, lane-dense operands; matmul-only operands pre-cast to bf16 in HBM
    edata_mean_all = jnp.stack(edata_list).reshape(NT, P, E, D).astype(bf)
    w_rnn_all = jnp.stack(wrnn_list).reshape(NT, P, D, HD).astype(bf)
    b_rnn_all = jnp.stack(brnn_list).reshape(NT, P, 1, HD)                   # f32
    bd_attn_all = jnp.stack(bdattn_list).reshape(NT, P, HD, HD).astype(bf)
    onehot_all = jnp.stack(onehot_list).reshape(NT, P, T, E).astype(bf)      # 0/1: exact in bf16
    w1_all = jnp.stack(w1_list).astype(bf)                                   # (NT, HD, A)
    b1_all = jnp.stack(b1_list)                                              # (NT, 1, A) f32
    w2t_all = jnp.stack([w.T for w in w2_list])                              # (NT, 1, A) f32
    wfc_pad_all = jnp.stack(
        [jnp.pad(w, ((0, 0), (0, OUTP - OUT))) for w in wfc_list]).astype(bf)    # (NT, HD, 128)
    bfc_pad_all = jnp.stack(
        [jnp.pad(b, ((0, 0), (0, OUTP - OUT))) for b in bfc_list])               # (NT, 1, 128)

    logits_pad, h_all = magnn_lp_forward(
        edata_mean_all, w_rnn_all, b_rnn_all, bd_attn_all, onehot_all,
        w1_all, b1_all, w2t_all, wfc_pad_all, bfc_pad_all,
        num_ntypes=NT, num_metapaths=P, in_dim=D, num_heads=H)
    logits_all = logits_pad[:, :, :OUT]                          # strip lane padding
    jax.block_until_ready(logits_all)
    jax.block_until_ready(h_all)

    # validate against the pure-JAX f32 reference
    for nt in range(NT):
        outs_ref = jnp.stack([
            _ref_metapath(edata_list[nt * P + q], wrnn_list[nt * P + q],
                          brnn_list[nt * P + q], attn_list[nt * P + q],
                          onehot_list[nt * P + q], H, D)
            for q in range(P)])
        logits_r, h_r = _ref_ntype(outs_ref, w1_list[nt], b1_list[nt], w2_list[nt],
                                   wfc_list[nt], bfc_list[nt])
        assert logits_all[nt].shape == (T, OUT) and h_all[nt].shape == (T, HD)
        assert jnp.allclose(h_all[nt], h_r, rtol=5e-2, atol=5e-2), \
            float(jnp.max(jnp.abs(h_all[nt] - h_r)))
        assert jnp.allclose(logits_all[nt], logits_r, rtol=5e-2, atol=5e-2), \
            float(jnp.max(jnp.abs(logits_all[nt] - logits_r)))

    # module output structure:
    #   ([logits_microbe, logits_disease, logits_metabolite], [h_microbe, h_disease, h_metabolite])
    logits_list = [logits_all[nt] for nt in range(NT)]
    h_list = [h_all[nt] for nt in range(NT)]
    for x in logits_list + h_list:
        jax.block_until_ready(x)
    print("KERNEL_OK")
</pallas_src>

<mosaic_0001>
module attributes {stable_mosaic.version = 11 : i64} {
  func.func @kernel(%arg0: i32, %arg1: memref<1x2x32x32xbf16, #tpu.memory_space<vmem>>, %arg2: memref<1x2x32x128xbf16, #tpu.memory_space<vmem>>, %arg3: memref<1x2x1x128xf32, #tpu.memory_space<vmem>>, %arg4: memref<1x2x128x128xbf16, #tpu.memory_space<vmem>>, %arg5: memref<1x2x8x32xbf16, #tpu.memory_space<vmem>>, %arg6: memref<1x128x16xbf16, #tpu.memory_space<vmem>>, %arg7: memref<1x1x16xf32, #tpu.memory_space<vmem>>, %arg8: memref<1x1x16xf32, #tpu.memory_space<vmem>>, %arg9: memref<1x128x128xbf16, #tpu.memory_space<vmem>>, %arg10: memref<1x1x128xf32, #tpu.memory_space<vmem>>, %arg11: memref<1x8x128xf32, #tpu.memory_space<vmem>>, %arg12: memref<1x8x128xf32, #tpu.memory_space<vmem>>, %arg13: memref<32x256xbf16, #tpu.memory_space<vmem>>) attributes {dimension_semantics = [#tpu.dimension_semantics<parallel>], iteration_bounds = array<i64: 3>, scalar_prefetch = 0 : i64, scratch_operands = 1 : i64, tpu.core_type = #tpu.core_type<tc>, window_params = [{transform_indices = @transform_0, window_bounds = array<i64: 1, 2, 32, 32>}, {transform_indices = @transform_1, window_bounds = array<i64: 1, 2, 32, 128>}, {transform_indices = @transform_2, window_bounds = array<i64: 1, 2, 1, 128>}, {transform_indices = @transform_3, window_bounds = array<i64: 1, 2, 128, 128>}, {transform_indices = @transform_4, window_bounds = array<i64: 1, 2, 8, 32>}, {transform_indices = @transform_5, window_bounds = array<i64: 1, 128, 16>}, {transform_indices = @transform_6, window_bounds = array<i64: 1, 1, 16>}, {transform_indices = @transform_7, window_bounds = array<i64: 1, 1, 16>}, {transform_indices = @transform_8, window_bounds = array<i64: 1, 128, 128>}, {transform_indices = @transform_9, window_bounds = array<i64: 1, 1, 128>}, {transform_indices = @transform_10, window_bounds = array<i64: 1, 8, 128>}, {transform_indices = @transform_11, window_bounds = array<i64: 1, 8, 128>}]} {
    %c0 = arith.constant 0 : index
    %c0_0 = arith.constant 0 : index
    %c0_1 = arith.constant 0 : index
    %c0_2 = arith.constant 0 : index
    %0 = vector.load %arg1[%c0, %c0_0, %c0_1, %c0_2] : memref<1x2x32x32xbf16, #tpu.memory_space<vmem>>, vector<1x1x32x32xbf16>
    %1 = vector.shape_cast %0 : vector<1x1x32x32xbf16> to vector<32x32xbf16>
    %c0_3 = arith.constant 0 : index
    %c0_4 = arith.constant 0 : index
    %c0_5 = arith.constant 0 : index
    %c0_6 = arith.constant 0 : index
    %2 = vector.load %arg2[%c0_3, %c0_4, %c0_5, %c0_6] : memref<1x2x32x128xbf16, #tpu.memory_space<vmem>>, vector<1x1x32x128xbf16>
    %3 = vector.shape_cast %2 : vector<1x1x32x128xbf16> to vector<32x128xbf16>
    %cst = arith.constant dense<0.000000e+00> : vector<32x128xf32>
    %4 = tpu.matmul %1, %3, %cst {dimension_numbers = #tpu.dot_dimension_numbers<[1], [0], [0], [1], [0, 0, 1, 1], [], []>} : vector<32x32xbf16>, vector<32x128xbf16>, vector<32x128xf32> -> vector<32x128xf32>
    %c0_7 = arith.constant 0 : index
    %c0_8 = arith.constant 0 : index
    %c0_9 = arith.constant 0 : index
    %c0_10 = arith.constant 0 : index
    %5 = vector.load %arg3[%c0_7, %c0_8, %c0_9, %c0_10] : memref<1x2x1x128xf32, #tpu.memory_space<vmem>>, vector<1x1x1x128xf32>
    %6 = vector.shape_cast %5 : vector<1x1x1x128xf32> to vector<1x128xf32>
    %7 = vector.broadcast %6 : vector<1x128xf32> to vector<32x128xf32>
    %8 = arith.addf %4, %7 : vector<32x128xf32>
    %9 = arith.truncf %8 : vector<32x128xf32> to vector<32x128xbf16>
    %c0_11 = arith.constant 0 : index
    %c0_12 = arith.constant 0 : index
    %c0_13 = arith.constant 0 : index
    %c0_14 = arith.constant 0 : index
    %10 = vector.load %arg4[%c0_11, %c0_12, %c0_13, %c0_14] : memref<1x2x128x128xbf16, #tpu.memory_space<vmem>>, vector<1x1x128x128xbf16>
    %11 = vector.shape_cast %10 : vector<1x1x128x128xbf16> to vector<128x128xbf16>
    %cst_15 = arith.constant dense<0.000000e+00> : vector<32x128xf32>
    %12 = tpu.matmul %9, %11, %cst_15 {dimension_numbers = #tpu.dot_dimension_numbers<[1], [0], [0], [1], [0, 0, 1, 1], [], []>} : vector<32x128xbf16>, vector<128x128xbf16>, vector<32x128xf32> -> vector<32x128xf32>
    %cst_16 = arith.constant 0.000000e+00 : f32
    %13 = vector.broadcast %cst_16 : f32 to vector<32x128xf32>
    %14 = arith.cmpf ogt, %12, %13 : vector<32x128xf32>
    %cst_17 = arith.constant 0.00999999977 : f32
    %15 = vector.broadcast %cst_17 : f32 to vector<32x128xf32>
    %16 = arith.mulf %15, %12 : vector<32x128xf32>
    %17 = arith.select %14, %12, %16 : vector<32x128xi1>, vector<32x128xf32>
    %cst_18 = arith.constant dense<0xFF800000> : vector<128xf32>
    %18 = vector.multi_reduction <maximumf>, %17, %cst_18 [0] : vector<32x128xf32> to vector<128xf32>
    %19 = vector.shape_cast %18 : vector<128xf32> to vector<1x128xf32>
    %20 = vector.broadcast %19 : vector<1x128xf32> to vector<32x128xf32>
    %21 = arith.subf %17, %20 : vector<32x128xf32>
    %22 = math.exp %21 : vector<32x128xf32>
    %23 = arith.mulf %8, %22 : vector<32x128xf32>
    %24 = arith.truncf %23 : vector<32x128xf32> to vector<32x128xbf16>
    %c0_19 = arith.constant 0 : index
    %c0_20 = arith.constant 0 : index
    %25 = vector.load %arg13[%c0_19, %c0_20] : memref<32x256xbf16, #tpu.memory_space<vmem>>, vector<32x128xbf16>
    tpu.vector_store %arg13[%c0_19, %c0_20], %24 {strides = array<i32>} : memref<32x256xbf16, #tpu.memory_space<vmem>>, vector<32x128xbf16>,
    %26 = arith.truncf %22 : vector<32x128xf32> to vector<32x128xbf16>
    %c0_21 = arith.constant 0 : index
    %c128 = arith.constant 128 : index
    %27 = vector.load %arg13[%c0_21, %c128] : memref<32x256xbf16, #tpu.memory_space<vmem>>, vector<32x128xbf16>
    tpu.vector_store %arg13[%c0_21, %c128], %26 {strides = array<i32>} : memref<32x256xbf16, #tpu.memory_space<vmem>>, vector<32x128xbf16>,
    %c0_22 = arith.constant 0 : index
    %c0_23 = arith.constant 0 : index
    %c0_24 = arith.constant 0 : index
    %c0_25 = arith.constant 0 : index
    %28 = vector.load %arg5[%c0_22, %c0_23, %c0_24, %c0_25] : memref<1x2x8x32xbf16, #tpu.memory_space<vmem>>, vector<1x1x8x32xbf16>
    %29 = vector.shape_cast %28 : vector<1x1x8x32xbf16> to vector<8x32xbf16>
    %c0_26 = arith.constant 0 : index
    %c0_27 = arith.constant 0 : index
    %30 = vector.load %arg13[%c0_26, %c0_27] : memref<32x256xbf16, #tpu.memory_space<vmem>>, vector<32x256xbf16>
    %cst_28 = arith.constant dense<0.000000e+00> : vector<8x256xf32>
    %31 = tpu.matmul %29, %30, %cst_28 {dimension_numbers = #tpu.dot_dimension_numbers<[1], [0], [0], [1], [0, 0, 1, 1], [], []>} : vector<8x32xbf16>, vector<32x256xbf16>, vector<8x256xf32> -> vector<8x256xf32>
    %32 = vector.extract_strided_slice %31 {offsets = [0, 0], sizes = [8, 128], strides = [1, 1]} : vector<8x256xf32> to vector<8x128xf32>
    %33 = vector.extract_strided_slice %31 {offsets = [0, 128], sizes = [8, 128], strides = [1, 1]} : vector<8x256xf32> to vector<8x128xf32>
    %cst_29 = arith.constant 0.000000e+00 : f32
    %34 = vector.broadcast %cst_29 : f32 to vector<8x128xf32>
    %35 = arith.cmpf ole, %33, %34 : vector<8x128xf32>
    %36 = vector.extract_strided_slice %31 {offsets = [0, 128], sizes = [8, 128], strides = [1, 1]} : vector<8x256xf32> to vector<8x128xf32>
    %cst_30 = arith.constant 1.000000e+00 : f32
    %37 = vector.broadcast %cst_30 : f32 to vector<8x128xf32>
    %38 = arith.select %35, %37, %36 : vector<8x128xi1>, vector<8x128xf32>
    %39 = tpu.reciprocal %38 {approx = true} : vector<8x128xf32> -> vector<8x128xf32>
    %40 = arith.mulf %32, %39 : vector<8x128xf32>
    %cst_31 = arith.constant 0.000000e+00 : f32
    %41 = vector.broadcast %cst_31 : f32 to vector<8x128xf32>
    %42 = arith.cmpf ogt, %40, %41 : vector<8x128xf32>
    %cst_32 = arith.constant 0.000000e+00 : f32
    %43 = vector.broadcast %cst_32 : f32 to vector<8x128xf32>
    %44 = arith.minimumf %40, %43 : vector<8x128xf32>
    %45 = math.exp %44 : vector<8x128xf32>
    %cst_33 = arith.constant 1.000000e+00 : f32
    %46 = vector.broadcast %cst_33 : f32 to vector<8x128xf32>
    %47 = arith.subf %45, %46 : vector<8x128xf32>
    %48 = arith.select %42, %40, %47 : vector<8x128xi1>, vector<8x128xf32>
    %49 = arith.truncf %48 : vector<8x128xf32> to vector<8x128xbf16>
    %c0_34 = arith.constant 0 : index
    %c0_35 = arith.constant 0 : index
    %c0_36 = arith.constant 0 : index
    %50 = vector.load %arg6[%c0_34, %c0_35, %c0_36] : memref<1x128x16xbf16, #tpu.memory_space<vmem>>, vector<1x128x16xbf16>
    %51 = vector.shape_cast %50 : vector<1x128x16xbf16> to vector<128x16xbf16>
    %cst_37 = arith.constant dense<0.000000e+00> : vector<8x16xf32>
    %52 = tpu.matmul %49, %51, %cst_37 {dimension_numbers = #tpu.dot_dimension_numbers<[1], [0], [0], [1], [0, 0, 1, 1], [], []>} : vector<8x128xbf16>, vector<128x16xbf16>, vector<8x16xf32> -> vector<8x16xf32>
    %c0_38 = arith.constant 0 : index
    %c0_39 = arith.constant 0 : index
    %c0_40 = arith.constant 0 : index
    %53 = vector.load %arg7[%c0_38, %c0_39, %c0_40] : memref<1x1x16xf32, #tpu.memory_space<vmem>>, vector<1x1x16xf32>
    %54 = vector.shape_cast %53 : vector<1x1x16xf32> to vector<1x16xf32>
    %55 = vector.broadcast %54 : vector<1x16xf32> to vector<8x16xf32>
    %56 = arith.addf %52, %55 : vector<8x16xf32>
    %57 = math.tanh %56 : vector<8x16xf32>
    %cst_41 = arith.constant dense<0.000000e+00> : vector<16xf32>
    %58 = vector.multi_reduction <add>, %57, %cst_41 [0] : vector<8x16xf32> to vector<16xf32>
    %59 = vector.shape_cast %58 : vector<16xf32> to vector<1x16xf32>
    %cst_42 = arith.constant 8.000000e+00 : f32
    %60 = vector.broadcast %cst_42 : f32 to vector<1x16xf32>
    %61 = arith.divf %59, %60 : vector<1x16xf32>
    %c0_43 = arith.constant 0 : index
    %c0_44 = arith.constant 0 : index
    %c0_45 = arith.constant 0 : index
    %62 = vector.load %arg8[%c0_43, %c0_44, %c0_45] : memref<1x1x16xf32, #tpu.memory_space<vmem>>, vector<1x1x16xf32>
    %63 = vector.shape_cast %62 : vector<1x1x16xf32> to vector<1x16xf32>
    %64 = arith.mulf %61, %63 : vector<1x16xf32>
    %cst_46 = arith.constant dense<0.000000e+00> : vector<1xf32>
    %65 = vector.multi_reduction <add>, %64, %cst_46 [1] : vector<1x16xf32> to vector<1xf32>
    %66 = vector.shape_cast %65 : vector<1xf32> to vector<1x1xf32>
    %c0_47 = arith.constant 0 : index
    %c1 = arith.constant 1 : index
    %c0_48 = arith.constant 0 : index
    %c0_49 = arith.constant 0 : index
    %67 = vector.load %arg1[%c0_47, %c1, %c0_48, %c0_49] : memref<1x2x32x32xbf16, #tpu.memory_space<vmem>>, vector<1x1x32x32xbf16>
    %68 = vector.shape_cast %67 : vector<1x1x32x32xbf16> to vector<32x32xbf16>
    %c0_50 = arith.constant 0 : index
    %c1_51 = arith.constant 1 : index
    %c0_52 = arith.constant 0 : index
    %c0_53 = arith.constant 0 : index
    %69 = vector.load %arg2[%c0_50, %c1_51, %c0_52, %c0_53] : memref<1x2x32x128xbf16, #tpu.memory_space<vmem>>, vector<1x1x32x128xbf16>
    %70 = vector.shape_cast %69 : vector<1x1x32x128xbf16> to vector<32x128xbf16>
    %cst_54 = arith.constant dense<0.000000e+00> : vector<32x128xf32>
    %71 = tpu.matmul %68, %70, %cst_54 {dimension_numbers = #tpu.dot_dimension_numbers<[1], [0], [0], [1], [0, 0, 1, 1], [], []>} : vector<32x32xbf16>, vector<32x128xbf16>, vector<32x128xf32> -> vector<32x128xf32>
    %c0_55 = arith.constant 0 : index
    %c1_56 = arith.constant 1 : index
    %c0_57 = arith.constant 0 : index
    %c0_58 = arith.constant 0 : index
    %72 = vector.load %arg3[%c0_55, %c1_56, %c0_57, %c0_58] : memref<1x2x1x128xf32, #tpu.memory_space<vmem>>, vector<1x1x1x128xf32>
    %73 = vector.shape_cast %72 : vector<1x1x1x128xf32> to vector<1x128xf32>
    %74 = vector.broadcast %73 : vector<1x128xf32> to vector<32x128xf32>
    %75 = arith.addf %71, %74 : vector<32x128xf32>
    %76 = arith.truncf %75 : vector<32x128xf32> to vector<32x128xbf16>
    %c0_59 = arith.constant 0 : index
    %c1_60 = arith.constant 1 : index
    %c0_61 = arith.constant 0 : index
    %c0_62 = arith.constant 0 : index
    %77 = vector.load %arg4[%c0_59, %c1_60, %c0_61, %c0_62] : memref<1x2x128x128xbf16, #tpu.memory_space<vmem>>, vector<1x1x128x128xbf16>
    %78 = vector.shape_cast %77 : vector<1x1x128x128xbf16> to vector<128x128xbf16>
    %cst_63 = arith.constant dense<0.000000e+00> : vector<32x128xf32>
    %79 = tpu.matmul %76, %78, %cst_63 {dimension_numbers = #tpu.dot_dimension_numbers<[1], [0], [0], [1], [0, 0, 1, 1], [], []>} : vector<32x128xbf16>, vector<128x128xbf16>, vector<32x128xf32> -> vector<32x128xf32>
    %cst_64 = arith.constant 0.000000e+00 : f32
    %80 = vector.broadcast %cst_64 : f32 to vector<32x128xf32>
    %81 = arith.cmpf ogt, %79, %80 : vector<32x128xf32>
    %cst_65 = arith.constant 0.00999999977 : f32
    %82 = vector.broadcast %cst_65 : f32 to vector<32x128xf32>
    %83 = arith.mulf %82, %79 : vector<32x128xf32>
    %84 = arith.select %81, %79, %83 : vector<32x128xi1>, vector<32x128xf32>
    %cst_66 = arith.constant dense<0xFF800000> : vector<128xf32>
    %85 = vector.multi_reduction <maximumf>, %84, %cst_66 [0] : vector<32x128xf32> to vector<128xf32>
    %86 = vector.shape_cast %85 : vector<128xf32> to vector<1x128xf32>
    %87 = vector.broadcast %86 : vector<1x128xf32> to vector<32x128xf32>
    %88 = arith.subf %84, %87 : vector<32x128xf32>
    %89 = math.exp %88 : vector<32x128xf32>
    %90 = arith.mulf %75, %89 : vector<32x128xf32>
    %91 = arith.truncf %90 : vector<32x128xf32> to vector<32x128xbf16>
    %c0_67 = arith.constant 0 : index
    %c0_68 = arith.constant 0 : index
    %92 = vector.load %arg13[%c0_67, %c0_68] : memref<32x256xbf16, #tpu.memory_space<vmem>>, vector<32x128xbf16>
    tpu.vector_store %arg13[%c0_67, %c0_68], %91 {strides = array<i32>} : memref<32x256xbf16, #tpu.memory_space<vmem>>, vector<32x128xbf16>,
    %93 = arith.truncf %89 : vector<32x128xf32> to vector<32x128xbf16>
    %c0_69 = arith.constant 0 : index
    %c128_70 = arith.constant 128 : index
    %94 = vector.load %arg13[%c0_69, %c128_70] : memref<32x256xbf16, #tpu.memory_space<vmem>>, vector<32x128xbf16>
    tpu.vector_store %arg13[%c0_69, %c128_70], %93 {strides = array<i32>} : memref<32x256xbf16, #tpu.memory_space<vmem>>, vector<32x128xbf16>,
    %c0_71 = arith.constant 0 : index
    %c1_72 = arith.constant 1 : index
    %c0_73 = arith.constant 0 : index
    %c0_74 = arith.constant 0 : index
    %95 = vector.load %arg5[%c0_71, %c1_72, %c0_73, %c0_74] : memref<1x2x8x32xbf16, #tpu.memory_space<vmem>>, vector<1x1x8x32xbf16>
    %96 = vector.shape_cast %95 : vector<1x1x8x32xbf16> to vector<8x32xbf16>
    %c0_75 = arith.constant 0 : index
    %c0_76 = arith.constant 0 : index
    %97 = vector.load %arg13[%c0_75, %c0_76] : memref<32x256xbf16, #tpu.memory_space<vmem>>, vector<32x256xbf16>
    %cst_77 = arith.constant dense<0.000000e+00> : vector<8x256xf32>
    %98 = tpu.matmul %96, %97, %cst_77 {dimension_numbers = #tpu.dot_dimension_numbers<[1], [0], [0], [1], [0, 0, 1, 1], [], []>} : vector<8x32xbf16>, vector<32x256xbf16>, vector<8x256xf32> -> vector<8x256xf32>
    %99 = vector.extract_strided_slice %98 {offsets = [0, 0], sizes = [8, 128], strides = [1, 1]} : vector<8x256xf32> to vector<8x128xf32>
    %100 = vector.extract_strided_slice %98 {offsets = [0, 128], sizes = [8, 128], strides = [1, 1]} : vector<8x256xf32> to vector<8x128xf32>
    %cst_78 = arith.constant 0.000000e+00 : f32
    %101 = vector.broadcast %cst_78 : f32 to vector<8x128xf32>
    %102 = arith.cmpf ole, %100, %101 : vector<8x128xf32>
    %103 = vector.extract_strided_slice %98 {offsets = [0, 128], sizes = [8, 128], strides = [1, 1]} : vector<8x256xf32> to vector<8x128xf32>
    %cst_79 = arith.constant 1.000000e+00 : f32
    %104 = vector.broadcast %cst_79 : f32 to vector<8x128xf32>
    %105 = arith.select %102, %104, %103 : vector<8x128xi1>, vector<8x128xf32>
    %106 = tpu.reciprocal %105 {approx = true} : vector<8x128xf32> -> vector<8x128xf32>
    %107 = arith.mulf %99, %106 : vector<8x128xf32>
    %cst_80 = arith.constant 0.000000e+00 : f32
    %108 = vector.broadcast %cst_80 : f32 to vector<8x128xf32>
    %109 = arith.cmpf ogt, %107, %108 : vector<8x128xf32>
    %cst_81 = arith.constant 0.000000e+00 : f32
    %110 = vector.broadcast %cst_81 : f32 to vector<8x128xf32>
    %111 = arith.minimumf %107, %110 : vector<8x128xf32>
    %112 = math.exp %111 : vector<8x128xf32>
    %cst_82 = arith.constant 1.000000e+00 : f32
    %113 = vector.broadcast %cst_82 : f32 to vector<8x128xf32>
    %114 = arith.subf %112, %113 : vector<8x128xf32>
    %115 = arith.select %109, %107, %114 : vector<8x128xi1>, vector<8x128xf32>
    %116 = arith.truncf %115 : vector<8x128xf32> to vector<8x128xbf16>
    %c0_83 = arith.constant 0 : index
    %c0_84 = arith.constant 0 : index
    %c0_85 = arith.constant 0 : index
    %117 = vector.load %arg6[%c0_83, %c0_84, %c0_85] : memref<1x128x16xbf16, #tpu.memory_space<vmem>>, vector<1x128x16xbf16>
    %118 = vector.shape_cast %117 : vector<1x128x16xbf16> to vector<128x16xbf16>
    %cst_86 = arith.constant dense<0.000000e+00> : vector<8x16xf32>
    %119 = tpu.matmul %116, %118, %cst_86 {dimension_numbers = #tpu.dot_dimension_numbers<[1], [0], [0], [1], [0, 0, 1, 1], [], []>} : vector<8x128xbf16>, vector<128x16xbf16>, vector<8x16xf32> -> vector<8x16xf32>
    %c0_87 = arith.constant 0 : index
    %c0_88 = arith.constant 0 : index
    %c0_89 = arith.constant 0 : index
    %120 = vector.load %arg7[%c0_87, %c0_88, %c0_89] : memref<1x1x16xf32, #tpu.memory_space<vmem>>, vector<1x1x16xf32>
    %121 = vector.shape_cast %120 : vector<1x1x16xf32> to vector<1x16xf32>
    %122 = vector.broadcast %121 : vector<1x16xf32> to vector<8x16xf32>
    %123 = arith.addf %119, %122 : vector<8x16xf32>
    %124 = math.tanh %123 : vector<8x16xf32>
    %cst_90 = arith.constant dense<0.000000e+00> : vector<16xf32>
    %125 = vector.multi_reduction <add>, %124, %cst_90 [0] : vector<8x16xf32> to vector<16xf32>
    %126 = vector.shape_cast %125 : vector<16xf32> to vector<1x16xf32>
    %cst_91 = arith.constant 8.000000e+00 : f32
    %127 = vector.broadcast %cst_91 : f32 to vector<1x16xf32>
    %128 = arith.divf %126, %127 : vector<1x16xf32>
    %c0_92 = arith.constant 0 : index
    %c0_93 = arith.constant 0 : index
    %c0_94 = arith.constant 0 : index
    %129 = vector.load %arg8[%c0_92, %c0_93, %c0_94] : memref<1x1x16xf32, #tpu.memory_space<vmem>>, vector<1x1x16xf32>
    %130 = vector.shape_cast %129 : vector<1x1x16xf32> to vector<1x16xf32>
    %131 = arith.mulf %128, %130 : vector<1x16xf32>
    %cst_95 = arith.constant dense<0.000000e+00> : vector<1xf32>
    %132 = vector.multi_reduction <add>, %131, %cst_95 [1] : vector<1x16xf32> to vector<1xf32>
    %133 = vector.shape_cast %132 : vector<1xf32> to vector<1x1xf32>
    %134 = arith.maximumf %66, %133 : vector<1x1xf32>
    %135 = arith.subf %66, %134 : vector<1x1xf32>
    %136 = math.exp %135 : vector<1x1xf32>
    %137 = arith.subf %133, %134 : vector<1x1xf32>
    %138 = math.exp %137 : vector<1x1xf32>
    %139 = arith.addf %136, %138 : vector<1x1xf32>
    %140 = arith.divf %136, %139 : vector<1x1xf32>
    %141 = vector.broadcast %140 : vector<1x1xf32> to vector<8x128xf32>
    %142 = arith.mulf %141, %48 : vector<8x128xf32>
    %143 = arith.divf %138, %139 : vector<1x1xf32>
    %144 = vector.broadcast %143 : vector<1x1xf32> to vector<8x128xf32>
    %145 = arith.mulf %144, %115 : vector<8x128xf32>
    %146 = arith.addf %142, %145 : vector<8x128xf32>
    %c0_96 = arith.constant 0 : index
    %c0_97 = arith.constant 0 : index
    %c0_98 = arith.constant 0 : index
    %147 = vector.load %arg12[%c0_96, %c0_97, %c0_98] : memref<1x8x128xf32, #tpu.memory_space<vmem>>, vector<1x8x128xf32>
    %148 = vector.shape_cast %147 : vector<1x8x128xf32> to vector<8x128xf32>
    %149 = vector.shape_cast %146 : vector<8x128xf32> to vector<1x8x128xf32>
    tpu.vector_store %arg12[%c0_96, %c0_97, %c0_98], %149 {strides = array<i32>} : memref<1x8x128xf32, #tpu.memory_space<vmem>>, vector<1x8x128xf32>,
    %150 = arith.truncf %146 : vector<8x128xf32> to vector<8x128xbf16>
    %c0_99 = arith.constant 0 : index
    %c0_100 = arith.constant 0 : index
    %c0_101 = arith.constant 0 : index
    %151 = vector.load %arg9[%c0_99, %c0_100, %c0_101] : memref<1x128x128xbf16, #tpu.memory_space<vmem>>, vector<1x128x128xbf16>
    %152 = vector.shape_cast %151 : vector<1x128x128xbf16> to vector<128x128xbf16>
    %cst_102 = arith.constant dense<0.000000e+00> : vector<8x128xf32>
    %153 = tpu.matmul %150, %152, %cst_102 {dimension_numbers = #tpu.dot_dimension_numbers<[1], [0], [0], [1], [0, 0, 1, 1], [], []>} : vector<8x128xbf16>, vector<128x128xbf16>, vector<8x128xf32> -> vector<8x128xf32>
    %c0_103 = arith.constant 0 : index
    %c0_104 = arith.constant 0 : index
    %c0_105 = arith.constant 0 : index
    %154 = vector.load %arg10[%c0_103, %c0_104, %c0_105] : memref<1x1x128xf32, #tpu.memory_space<vmem>>, vector<1x1x128xf32>
    %155 = vector.shape_cast %154 : vector<1x1x128xf32> to vector<1x128xf32>
    %156 = vector.broadcast %155 : vector<1x128xf32> to vector<8x128xf32>
    %157 = arith.addf %153, %156 : vector<8x128xf32>
    %c0_106 = arith.constant 0 : index
    %c0_107 = arith.constant 0 : index
    %c0_108 = arith.constant 0 : index
    %158 = vector.load %arg11[%c0_106, %c0_107, %c0_108] : memref<1x8x128xf32, #tpu.memory_space<vmem>>, vector<1x8x128xf32>
    %159 = vector.shape_cast %158 : vector<1x8x128xf32> to vector<8x128xf32>
    %160 = vector.shape_cast %157 : vector<8x128xf32> to vector<1x8x128xf32>
    tpu.vector_store %arg11[%c0_106, %c0_107, %c0_108], %160 {strides = array<i32>} : memref<1x8x128xf32, #tpu.memory_space<vmem>>, vector<1x8x128xf32>,
    return
  }
  func.func @transform_0(%arg0: i32) -> (i32, i32, i32, i32) {
    %c0_i32 = arith.constant 0 : i32
    %c0_i32_0 = arith.constant 0 : i32
    %c0_i32_1 = arith.constant 0 : i32
    %c0_i32_2 = arith.constant 0 : i32
    return %arg0, %c0_i32, %c0_i32_0, %c0_i32_1 : i32, i32, i32, i32
  }
  func.func @transform_1(%arg0: i32) -> (i32, i32, i32, i32) {
    %c0_i32 = arith.constant 0 : i32
    %c0_i32_0 = arith.constant 0 : i32
    %c0_i32_1 = arith.constant 0 : i32
    %c0_i32_2 = arith.constant 0 : i32
    return %arg0, %c0_i32, %c0_i32_0, %c0_i32_1 : i32, i32, i32, i32
  }
  func.func @transform_2(%arg0: i32) -> (i32, i32, i32, i32) {
    %c0_i32 = arith.constant 0 : i32
    %c0_i32_0 = arith.constant 0 : i32
    %c0_i32_1 = arith.constant 0 : i32
    %c0_i32_2 = arith.constant 0 : i32
    return %arg0, %c0_i32, %c0_i32_0, %c0_i32_1 : i32, i32, i32, i32
  }
  func.func @transform_3(%arg0: i32) -> (i32, i32, i32, i32) {
    %c0_i32 = arith.constant 0 : i32
    %c0_i32_0 = arith.constant 0 : i32
    %c0_i32_1 = arith.constant 0 : i32
    %c0_i32_2 = arith.constant 0 : i32
    return %arg0, %c0_i32, %c0_i32_0, %c0_i32_1 : i32, i32, i32, i32
  }
  func.func @transform_4(%arg0: i32) -> (i32, i32, i32, i32) {
    %c0_i32 = arith.constant 0 : i32
    %c0_i32_0 = arith.constant 0 : i32
    %c0_i32_1 = arith.constant 0 : i32
    %c0_i32_2 = arith.constant 0 : i32
    return %arg0, %c0_i32, %c0_i32_0, %c0_i32_1 : i32, i32, i32, i32
  }
  func.func @transform_5(%arg0: i32) -> (i32, i32, i32) {
    %c0_i32 = arith.constant 0 : i32
    %c0_i32_0 = arith.constant 0 : i32
    %c0_i32_1 = arith.constant 0 : i32
    return %arg0, %c0_i32, %c0_i32_0 : i32, i32, i32
  }
  func.func @transform_6(%arg0: i32) -> (i32, i32, i32) {
    %c0_i32 = arith.constant 0 : i32
    %c0_i32_0 = arith.constant 0 : i32
    %c0_i32_1 = arith.constant 0 : i32
    return %arg0, %c0_i32, %c0_i32_0 : i32, i32, i32
  }
  func.func @transform_7(%arg0: i32) -> (i32, i32, i32) {
    %c0_i32 = arith.constant 0 : i32
    %c0_i32_0 = arith.constant 0 : i32
    %c0_i32_1 = arith.constant 0 : i32
    return %arg0, %c0_i32, %c0_i32_0 : i32, i32, i32
  }
  func.func @transform_8(%arg0: i32) -> (i32, i32, i32) {
    %c0_i32 = arith.constant 0 : i32
    %c0_i32_0 = arith.constant 0 : i32
    %c0_i32_1 = arith.constant 0 : i32
    return %arg0, %c0_i32, %c0_i32_0 : i32, i32, i32
  }
  func.func @transform_9(%arg0: i32) -> (i32, i32, i32) {
    %c0_i32 = arith.constant 0 : i32
    %c0_i32_0 = arith.constant 0 : i32
    %c0_i32_1 = arith.constant 0 : i32
    return %arg0, %c0_i32, %c0_i32_0 : i32, i32, i32
  }
  func.func @transform_10(%arg0: i32) -> (i32, i32, i32) {
    %c0_i32 = arith.constant 0 : i32
    %c0_i32_0 = arith.constant 0 : i32
    %c0_i32_1 = arith.constant 0 : i32
    return %arg0, %c0_i32, %c0_i32_0 : i32, i32, i32
  }
  func.func @transform_11(%arg0: i32) -> (i32, i32, i32) {
    %c0_i32 = arith.constant 0 : i32
    %c0_i32_0 = arith.constant 0 : i32
    %c0_i32_1 = arith.constant 0 : i32
    return %arg0, %c0_i32, %c0_i32_0 : i32, i32, i32
  }
}

</mosaic_0001>

<llo_original>
// kernel: tpu_custom_call.1
$region0: #{tpu_custom_call.1}
  #allocation0 [shape = 'u32[]', space=smem, size = 0x4, offset = 0x4, fixed_abs, tag = 'smem constant byte address 0x4 - core index']
  #allocation1 [shape = 'u32[144,128]{1,0:T(1,128)}', space=vmem, size = 0x12000, scoped, tag = 'internal scratch']
  #allocation2 [shape = 'bf16[32,256]{1,0:T(16,128)(2,1)}', space=vmem, size = 0x4000, scoped, tag = 'scratch operand']
  %s0 = inlined_call_operand.hbm [shape: bf16[3,2,32,32], index: 0, kind: input, shape index: {}]
  %s1 = inlined_call_operand.hbm [shape: bf16[3,2,32,128], index: 1, kind: input, shape index: {}]
  %s2 = inlined_call_operand.vmem [shape: f32[3,2,1,128], index: 2, kind: input, shape index: {}]
  %s3 = inlined_call_operand.hbm [shape: bf16[3,2,128,128], index: 3, kind: input, shape index: {}]
  %s4 = inlined_call_operand.vmem [shape: bf16[3,2,8,32], index: 4, kind: input, shape index: {}]
  %s5 = inlined_call_operand.vmem [shape: bf16[3,128,16], index: 5, kind: input, shape index: {}]
  %s6 = inlined_call_operand.vmem [shape: f32[3,1,16], index: 6, kind: input, shape index: {}]
  %s7 = inlined_call_operand.vmem [shape: f32[3,1,16], index: 7, kind: input, shape index: {}]
  %s8 = inlined_call_operand.vmem [shape: bf16[3,128,128], index: 8, kind: input, shape index: {}]
  %s9 = inlined_call_operand.vmem [shape: f32[3,1,128], index: 9, kind: input, shape index: {}]
  %s10 = inlined_call_operand.hbm [shape: f32[3,8,128], index: 10, kind: output, shape index: {0}]
  %s11 = inlined_call_operand.hbm [shape: f32[3,8,128], index: 11, kind: output, shape index: {1}]
  %12 = xla_tuple %s10, %s11
  %s13 = sld [smem:[#allocation0]]
  $region93: #{tpu_custom_call.1} parent=0
    _
  %s15 = ssub.s32 1, %s13
  %s16 = scalar_select 0, %s15, %s13
  $region1: #{tpu_custom_call.1} parent=0
    #allocation3 [shape = 'u8[32768]{0}', space=vmem, size = 0x8000, scoped, tag = 'input window, operand 0']
    #allocation4 [shape = 's32[2]{0}', space=sflag, size = 0x8, scoped, tag = 'scoped memory for tpu_custom_call.1']
    #allocation5 [shape = 's32[2]{0}', space=sflag, size = 0x8, scoped, tag = 'scoped memory for tpu_custom_call.1']
    #allocation6 [shape = 'u8[32768]{0}', space=vmem, size = 0x8000, scoped, tag = 'input window, operand 1']
    #allocation7 [shape = 's32[2]{0}', space=sflag, size = 0x8, scoped, tag = 'scoped memory for tpu_custom_call.1']
    #allocation8 [shape = 'u8[131072]{0}', space=vmem, size = 0x20000, scoped, tag = 'input window, operand 3']
    #allocation9 [shape = 'u8[8192]{0}', space=vmem, size = 0x2000, scoped, tag = 'output window, operand 0']
    #allocation10 [shape = 'u8[8192]{0}', space=vmem, size = 0x2000, scoped, tag = 'output window, operand 1']
    #allocation11 [shape = 's32[2]{0}', space=sflag, size = 0x8, scoped, tag = 'scoped memory for tpu_custom_call.1']
    %17 = vsyncpa [#allocation4], 0
    %s18 = scalar_lea.sflag [#allocation4], 1
    %19 = vsyncpa %s18, 0
    %20 = vsyncpa [#allocation7], 0
    %s21 = scalar_lea.sflag [#allocation7], 1
    %22 = vsyncpa %s21, 0
    %23 = vsyncpa [#allocation5], 0
    %s24 = scalar_lea.sflag [#allocation5], 1
    %25 = vsyncpa %s24, 0
    %26 = vsyncpa [#allocation11], 0
    %s27 = scalar_lea.sflag [#allocation11], 1
    %28 = vsyncpa %s27, 0
    loop: start=0, step=1, limit=5
    $region2: #{tpu_custom_call.1} parent=1 // loop_pre_header
      _
    $region3: #{tpu_custom_call.1} parent=1 // loop_header
      %s30 = sphi 0, %s34
      %p31 = scmp.ge.s32.totalorder %s30, 5
      %s40 = sphi 0, %s42
      %s43 = sphi 0, %s40
      %s44 = sphi 0, %s43
      %s60 = sphi 0, %s44
      %s66 = sphi 0, %s68
      %s69 = sphi 0, %s66
      %s70 = sphi 0, %s69
      %s86 = sphi 0, %s70
      %s92 = sphi 0, %s94
      %s95 = sphi 0, %s92
      %s96 = sphi 0, %s95
      %s112 = sphi 0, %s96
      %s118 = sphi 0, %s120
      %s121 = sphi 0, %s118
      %s122 = sphi 0, %s121
      %s138 = sphi 0, %s122
      %s144 = sphi 0, %s146
      %s147 = sphi 0, %s144
      %s148 = sphi 0, %s147
      %s164 = sphi 0, %s148
      %s170 = sphi 0, %s172
      %s173 = sphi 0, %s170
      %s174 = sphi 0, %s173
      %s190 = sphi 0, %s174
      %s196 = sphi 0, %s198
      %s199 = sphi 0, %s196
      %s200 = sphi 0, %s199
      %s216 = sphi 0, %s200
      %s222 = sphi 0, %s224
      %s225 = sphi 0, %s222
      %s226 = sphi 0, %s225
      %s242 = sphi 0, %s226
      %s248 = sphi 0, %s250
      %s251 = sphi 0, %s248
      %s252 = sphi 0, %s251
      %s268 = sphi 0, %s252
      %s274 = sphi 0, %s276
      %s277 = sphi 0, %s274
      %s278 = sphi 0, %s277
      %s294 = sphi 0, %s278
      %s300 = sphi 0, %s302
      %s303 = sphi 0, %s300
      %s304 = sphi 0, %s303
      %s320 = sphi 0, %s304
      %s326 = sphi 0, %s328
      %s329 = sphi 0, %s326
      %s330 = sphi 0, %s329
      %s346 = sphi 0, %s330
    $region4: #{tpu_custom_call.1} parent=1 // loop_header_branch
      %33 = sbr.rel (%p31) target = $region8
    $region5: #{tpu_custom_call.1} parent=1 // loop_body
      %s35 = ssub.s32 %s30, 1
      %s36 = ssub.s32 %s30, 2
      %s37 = sadd.s32 %s30, 1
      %s38 = ssub.s32 %s30, %s37
      %p39 = scmp.eq.s32.totalorder %s38, 0
      %s41 = sadd.s32 %s40, 1
      %s42 = scalar_select %p39, %s40, %s41
      %p45 = pneg %p39
      %p46 = scmp.eq.s32.totalorder %s30, 2
      %p47 = por %p45, %p46
      %p48 = scmp.ne.s32.totalorder %s40, %s43
      %p49 = scmp.eq.s32.totalorder %s30, 0
      %p50 = por %p48, %p49
      %p51 = scmp.ne.s32.totalorder %s40, %s43
      %p52 = scmp.eq.s32.totalorder %s35, 2
      %p53 = por %p51, %p52
      %p54 = scmp.ne.s32.totalorder %s43, %s44
      %p55 = scmp.eq.s32.totalorder %s35, 0
      %p56 = por %p54, %p55
      %p57 = scmp.ne.s32.totalorder %s43, %s44
      %p58 = scmp.eq.s32.totalorder %s36, 2
      %p59 = por %p57, %p58
      %p61 = scmp.ne.s32.totalorder %s44, %s60
      %p62 = scmp.eq.s32.totalorder %s36, 0
      %p63 = por %p61, %p62
      %s64 = ssub.s32 %s30, %s37
      %p65 = scmp.eq.s32.totalorder %s64, 0
      %s67 = sadd.s32 %s66, 1
      %s68 = scalar_select %p65, %s66, %s67
      %p71 = pneg %p65
      %p72 = scmp.eq.s32.totalorder %s30, 2
      %p73 = por %p71, %p72
      %p74 = scmp.ne.s32.totalorder %s66, %s69
      %p75 = scmp.eq.s32.totalorder %s30, 0
      %p76 = por %p74, %p75
      %p77 = scmp.ne.s32.totalorder %s66, %s69
      %p78 = scmp.eq.s32.totalorder %s35, 2
      %p79 = por %p77, %p78
      %p80 = scmp.ne.s32.totalorder %s69, %s70
      %p81 = scmp.eq.s32.totalorder %s35, 0
      %p82 = por %p80, %p81
      %p83 = scmp.ne.s32.totalorder %s69, %s70
      %p84 = scmp.eq.s32.totalorder %s36, 2
      %p85 = por %p83, %p84
      %p87 = scmp.ne.s32.totalorder %s70, %s86
      %p88 = scmp.eq.s32.totalorder %s36, 0
      %p89 = por %p87, %p88
      %s90 = ssub.s32 %s30, %s37
      %p91 = scmp.eq.s32.totalorder %s90, 0
      %s93 = sadd.s32 %s92, 1
      %s94 = scalar_select %p91, %s92, %s93
      %p97 = pneg %p91
      %p98 = scmp.eq.s32.totalorder %s30, 2
      %p99 = por %p97, %p98
      %p100 = scmp.ne.s32.totalorder %s92, %s95
      %p101 = scmp.eq.s32.totalorder %s30, 0
      %p102 = por %p100, %p101
      %p103 = scmp.ne.s32.totalorder %s92, %s95
      %p104 = scmp.eq.s32.totalorder %s35, 2
      %p105 = por %p103, %p104
      %p106 = scmp.ne.s32.totalorder %s95, %s96
      %p107 = scmp.eq.s32.totalorder %s35, 0
      %p108 = por %p106, %p107
      %p109 = scmp.ne.s32.totalorder %s95, %s96
      %p110 = scmp.eq.s32.totalorder %s36, 2
      %p111 = por %p109, %p110
      %p113 = scmp.ne.s32.totalorder %s96, %s112
      %p114 = scmp.eq.s32.totalorder %s36, 0
      %p115 = por %p113, %p114
      %s116 = ssub.s32 %s30, %s37
      %p117 = scmp.eq.s32.totalorder %s116, 0
      %s119 = sadd.s32 %s118, 1
      %s120 = scalar_select %p117, %s118, %s119
      %p123 = pneg %p117
      %p124 = scmp.eq.s32.totalorder %s30, 2
      %p125 = por %p123, %p124
      %p126 = scmp.ne.s32.totalorder %s118, %s121
      %p127 = scmp.eq.s32.totalorder %s30, 0
      %p128 = por %p126, %p127
      %p129 = scmp.ne.s32.totalorder %s118, %s121
      %p130 = scmp.eq.s32.totalorder %s35, 2
      %p131 = por %p129, %p130
      %p132 = scmp.ne.s32.totalorder %s121, %s122
      %p133 = scmp.eq.s32.totalorder %s35, 0
      %p134 = por %p132, %p133
      %p135 = scmp.ne.s32.totalorder %s121, %s122
      %p136 = scmp.eq.s32.totalorder %s36, 2
      %p137 = por %p135, %p136
      %p139 = scmp.ne.s32.totalorder %s122, %s138
      %p140 = scmp.eq.s32.totalorder %s36, 0
      %p141 = por %p139, %p140
      %s142 = ssub.s32 %s30, %s37
      %p143 = scmp.eq.s32.totalorder %s142, 0
      %s145 = sadd.s32 %s144, 1
      %s146 = scalar_select %p143, %s144, %s145
      %p149 = pneg %p143
      %p150 = scmp.eq.s32.totalorder %s30, 2
      %p151 = por %p149, %p150
      %p152 = scmp.ne.s32.totalorder %s144, %s147
      %p153 = scmp.eq.s32.totalorder %s30, 0
      %p154 = por %p152, %p153
      %p155 = scmp.ne.s32.totalorder %s144, %s147
      %p156 = scmp.eq.s32.totalorder %s35, 2
      %p157 = por %p155, %p156
      %p158 = scmp.ne.s32.totalorder %s147, %s148
      %p159 = scmp.eq.s32.totalorder %s35, 0
      %p160 = por %p158, %p159
      %p161 = scmp.ne.s32.totalorder %s147, %s148
      %p162 = scmp.eq.s32.totalorder %s36, 2
      %p163 = por %p161, %p162
      %p165 = scmp.ne.s32.totalorder %s148, %s164
      %p166 = scmp.eq.s32.totalorder %s36, 0
      %p167 = por %p165, %p166
      %s168 = ssub.s32 %s30, %s37
      %p169 = scmp.eq.s32.totalorder %s168, 0
      %s171 = sadd.s32 %s170, 1
      %s172 = scalar_select %p169, %s170, %s171
      %p175 = pneg %p169
      %p176 = scmp.eq.s32.totalorder %s30, 2
      %p177 = por %p175, %p176
      %p178 = scmp.ne.s32.totalorder %s170, %s173
      %p179 = scmp.eq.s32.totalorder %s30, 0
      %p180 = por %p178, %p179
      %p181 = scmp.ne.s32.totalorder %s170, %s173
      %p182 = scmp.eq.s32.totalorder %s35, 2
      %p183 = por %p181, %p182
      %p184 = scmp.ne.s32.totalorder %s173, %s174
      %p185 = scmp.eq.s32.totalorder %s35, 0
      %p186 = por %p184, %p185
      %p187 = scmp.ne.s32.totalorder %s173, %s174
      %p188 = scmp.eq.s32.totalorder %s36, 2
      %p189 = por %p187, %p188
      %p191 = scmp.ne.s32.totalorder %s174, %s190
      %p192 = scmp.eq.s32.totalorder %s36, 0
      %p193 = por %p191, %p192
      %s194 = ssub.s32 %s30, %s37
      %p195 = scmp.eq.s32.totalorder %s194, 0
      %s197 = sadd.s32 %s196, 1
      %s198 = scalar_select %p195, %s196, %s197
      %p201 = pneg %p195
      %p202 = scmp.eq.s32.totalorder %s30, 2
      %p203 = por %p201, %p202
      %p204 = scmp.ne.s32.totalorder %s196, %s199
      %p205 = scmp.eq.s32.totalorder %s30, 0
      %p206 = por %p204, %p205
      %p207 = scmp.ne.s32.totalorder %s196, %s199
      %p208 = scmp.eq.s32.totalorder %s35, 2
      %p209 = por %p207, %p208
      %p210 = scmp.ne.s32.totalorder %s199, %s200
      %p211 = scmp.eq.s32.totalorder %s35, 0
      %p212 = por %p210, %p211
      %p213 = scmp.ne.s32.totalorder %s199, %s200
      %p214 = scmp.eq.s32.totalorder %s36, 2
      %p215 = por %p213, %p214
      %p217 = scmp.ne.s32.totalorder %s200, %s216
      %p218 = scmp.eq.s32.totalorder %s36, 0
      %p219 = por %p217, %p218
      %s220 = ssub.s32 %s30, %s37
      %p221 = scmp.eq.s32.totalorder %s220, 0
      %s223 = sadd.s32 %s222, 1
      %s224 = scalar_select %p221, %s222, %s223
      %p227 = pneg %p221
      %p228 = scmp.eq.s32.totalorder %s30, 2
      %p229 = por %p227, %p228
      %p230 = scmp.ne.s32.totalorder %s222, %s225
      %p231 = scmp.eq.s32.totalorder %s30, 0
      %p232 = por %p230, %p231
      %p233 = scmp.ne.s32.totalorder %s222, %s225
      %p234 = scmp.eq.s32.totalorder %s35, 2
      %p235 = por %p233, %p234
      %p236 = scmp.ne.s32.totalorder %s225, %s226
      %p237 = scmp.eq.s32.totalorder %s35, 0
      %p238 = por %p236, %p237
      %p239 = scmp.ne.s32.totalorder %s225, %s226
      %p240 = scmp.eq.s32.totalorder %s36, 2
      %p241 = por %p239, %p240
      %p243 = scmp.ne.s32.totalorder %s226, %s242
      %p244 = scmp.eq.s32.totalorder %s36, 0
      %p245 = por %p243, %p244
      %s246 = ssub.s32 %s30, %s37
      %p247 = scmp.eq.s32.totalorder %s246, 0
      %s249 = sadd.s32 %s248, 1
      %s250 = scalar_select %p247, %s248, %s249
      %p253 = pneg %p247
      %p254 = scmp.eq.s32.totalorder %s30, 2
      %p255 = por %p253, %p254
      %p256 = scmp.ne.s32.totalorder %s248, %s251
      %p257 = scmp.eq.s32.totalorder %s30, 0
      %p258 = por %p256, %p257
      %p259 = scmp.ne.s32.totalorder %s248, %s251
      %p260 = scmp.eq.s32.totalorder %s35, 2
      %p261 = por %p259, %p260
      %p262 = scmp.ne.s32.totalorder %s251, %s252
      %p263 = scmp.eq.s32.totalorder %s35, 0
      %p264 = por %p262, %p263
      %p265 = scmp.ne.s32.totalorder %s251, %s252
      %p266 = scmp.eq.s32.totalorder %s36, 2
      %p267 = por %p265, %p266
      %p269 = scmp.ne.s32.totalorder %s252, %s268
      %p270 = scmp.eq.s32.totalorder %s36, 0
      %p271 = por %p269, %p270
      %s272 = ssub.s32 %s30, %s37
      %p273 = scmp.eq.s32.totalorder %s272, 0
      %s275 = sadd.s32 %s274, 1
      %s276 = scalar_select %p273, %s274, %s275
      %p279 = pneg %p273
      %p280 = scmp.eq.s32.totalorder %s30, 2
      %p281 = por %p279, %p280
      %p282 = scmp.ne.s32.totalorder %s274, %s277
      %p283 = scmp.eq.s32.totalorder %s30, 0
      %p284 = por %p282, %p283
      %p285 = scmp.ne.s32.totalorder %s274, %s277
      %p286 = scmp.eq.s32.totalorder %s35, 2
      %p287 = por %p285, %p286
      %p288 = scmp.ne.s32.totalorder %s277, %s278
      %p289 = scmp.eq.s32.totalorder %s35, 0
      %p290 = por %p288, %p289
      %p291 = scmp.ne.s32.totalorder %s277, %s278
      %p292 = scmp.eq.s32.totalorder %s36, 2
      %p293 = por %p291, %p292
      %p295 = scmp.ne.s32.totalorder %s278, %s294
      %p296 = scmp.eq.s32.totalorder %s36, 0
      %p297 = por %p295, %p296
      %s298 = ssub.s32 %s30, %s37
      %p299 = scmp.eq.s32.totalorder %s298, 0
      %s301 = sadd.s32 %s300, 1
      %s302 = scalar_select %p299, %s300, %s301
      %p305 = pneg %p299
      %p306 = scmp.eq.s32.totalorder %s30, 2
      %p307 = por %p305, %p306
      %p308 = scmp.ne.s32.totalorder %s300, %s303
      %p309 = scmp.eq.s32.totalorder %s30, 0
      %p310 = por %p308, %p309
      %p311 = scmp.ne.s32.totalorder %s300, %s303
      %p312 = scmp.eq.s32.totalorder %s35, 2
      %p313 = por %p311, %p312
      %p314 = scmp.ne.s32.totalorder %s303, %s304
      %p315 = scmp.eq.s32.totalorder %s35, 0
      %p316 = por %p314, %p315
      %p317 = scmp.ne.s32.totalorder %s303, %s304
      %p318 = scmp.eq.s32.totalorder %s36, 2
      %p319 = por %p317, %p318
      %p321 = scmp.ne.s32.totalorder %s304, %s320
      %p322 = scmp.eq.s32.totalorder %s36, 0
      %p323 = por %p321, %p322
      %s324 = ssub.s32 %s30, %s37
      %p325 = scmp.eq.s32.totalorder %s324, 0
      %s327 = sadd.s32 %s326, 1
      %s328 = scalar_select %p325, %s326, %s327
      %p331 = pneg %p325
      %p332 = scmp.eq.s32.totalorder %s30, 2
      %p333 = por %p331, %p332
      %p334 = scmp.ne.s32.totalorder %s326, %s329
      %p335 = scmp.eq.s32.totalorder %s30, 0
      %p336 = por %p334, %p335
      %p337 = scmp.ne.s32.totalorder %s326, %s329
      %p338 = scmp.eq.s32.totalorder %s35, 2
      %p339 = por %p337, %p338
      %p340 = scmp.ne.s32.totalorder %s329, %s330
      %p341 = scmp.eq.s32.totalorder %s35, 0
      %p342 = por %p340, %p341
      %p343 = scmp.ne.s32.totalorder %s329, %s330
      %p344 = scmp.eq.s32.totalorder %s36, 2
      %p345 = por %p343, %p344
      %p347 = scmp.ne.s32.totalorder %s330, %s346
      %p348 = scmp.eq.s32.totalorder %s36, 0
      %p349 = por %p347, %p348
      %p350 = scmp.le.s32.totalorder 1, %s30
      %p351 = scmp.lt.s32.totalorder %s30, 4
      %p352 = pnand %p350, %p351
      %p353 = pneg %p352
      // Predicated region
      $region9: #{tpu_custom_call.1} parent=5 // pred_check
        _
      $region10: #{tpu_custom_call.1} parent=5 // pred_check_branch
        %355 = sbr.rel (%p352) target = $region12
      $region11: #{tpu_custom_call.1} parent=5 // pred_region
        %s356 = ssub.s32 %s30, 1
      $region12: #{tpu_custom_call.1} parent=5 // pred_fallthru
        _
      %p357 = scmp.lt.s32.totalorder %s30, 3
      // Predicated region
      $region13: #{tpu_custom_call.1} parent=5 // pred_check
        %p358 = pneg %p357
      $region14: #{tpu_custom_call.1} parent=5 // pred_check_branch
        %360 = sbr.rel (%p358) target = $region16
      $region15: #{tpu_custom_call.1} parent=5 // pred_region
        // Predicated region
        $region17: #{tpu_custom_call.1} parent=15 // pred_check
          %p361 = pneg %p50
        $region18: #{tpu_custom_call.1} parent=15 // pred_check_branch
          %363 = sbr.rel (%p361) target = $region20
        $region19: #{tpu_custom_call.1} parent=15 // pred_region
          %s364 = sand.u32 %s40, 1
          %s365 = scalar_lea.sflag [#allocation4], %s364
          %s366 = sand.u32 %s40, 1
          %s367 = smul.addr %s366, 32
          %s368 = scalar_lea.vmem [#allocation3], %s367
          %s370 = ssub.s32 512, 512
          %371 = vsyncadd %s365, %s370
          %s372 = smul.addr %s30, 8
          %s373 = smul.addr %s372, 64
          %s374 = scalar_lea.hbm %s0, %s373
          %s375 = sshll.u32 %s368, 4
          %s376 = int_to_ptr.vmem [resolvable:$true] %s375
          %381 = dma.hbm_to_vmem [thread:$0]  %s374, 512, %s376, %s365, 64, 64, 4
        $region20: #{tpu_custom_call.1} parent=15 // pred_fallthru
          _
        // Predicated region
        $region21: #{tpu_custom_call.1} parent=15 // pred_check
          %p382 = pneg %p76
        $region22: #{tpu_custom_call.1} parent=15 // pred_check_branch
          %384 = sbr.rel (%p382) target = $region24
        $region23: #{tpu_custom_call.1} parent=15 // pred_region
          %s385 = sand.u32 %s30, 1
          %s386 = scalar_lea.sflag [#allocation7], %s385
          %s387 = sand.u32 %s66, 1
          %s388 = smul.addr %s387, 32
          %s389 = scalar_lea.vmem [#allocation6], %s388
          %s391 = ssub.s32 512, 512
          %392 = vsyncadd %s386, %s391
          %s393 = smul.addr %s30, 8
          %s394 = smul.addr %s393, 64
          %s395 = scalar_lea.hbm %s1, %s394
          %s396 = sshll.u32 %s389, 4
          %s397 = int_to_ptr.vmem [resolvable:$true] %s396
          %402 = dma.hbm_to_vmem [thread:$0]  %s395, 512, %s397, %s386, 64, 64, 4
        $region24: #{tpu_custom_call.1} parent=15 // pred_fallthru
          _
        // Predicated region
        $region25: #{tpu_custom_call.1} parent=15 // pred_check
          %p403 = pneg %p102
        $region26: #{tpu_custom_call.1} parent=15 // pred_check_branch
          %405 = sbr.rel (%p403) target = $region28
        $region27: #{tpu_custom_call.1} parent=15 // pred_region
          %p406 = scmp.lt.s32.totalorder %s30, 2
          %s407 = scalar_select %p406, %s30, 2
          %s408 = smul.addr %s407, 2
          %s409 = scalar_lea.vmem %s2, %s408
        $region28: #{tpu_custom_call.1} parent=15 // pred_fallthru
          _
        // Predicated region
        $region29: #{tpu_custom_call.1} parent=15 // pred_check
          %p410 = pneg %p128
        $region30: #{tpu_custom_call.1} parent=15 // pred_check_branch
          %412 = sbr.rel (%p410) target = $region32
        $region31: #{tpu_custom_call.1} parent=15 // pred_region
          %s413 = sand.u32 %s30, 1
          %s414 = scalar_lea.sflag [#allocation7], %s413
          %s415 = sand.u32 %s118, 1
          %s416 = smul.addr %s415, 128
          %s417 = scalar_lea.vmem [#allocation8], %s416
          %s419 = ssub.s32 2048, 2048
          %420 = vsyncadd %s414, %s419
          %s421 = smul.addr %s30, 32
          %s422 = smul.addr %s421, 64
          %s423 = scalar_lea.hbm %s3, %s422
          %s424 = sshll.u32 %s417, 4
          %s425 = int_to_ptr.vmem [resolvable:$true] %s424
          %430 = dma.hbm_to_vmem [thread:$0]  %s423, 2048, %s425, %s414, 64, 64, 4
        $region32: #{tpu_custom_call.1} parent=15 // pred_fallthru
          _
        // Predicated region
        $region33: #{tpu_custom_call.1} parent=15 // pred_check
          %p431 = pneg %p154
        $region34: #{tpu_custom_call.1} parent=15 // pred_check_branch
          %433 = sbr.rel (%p431) target = $region36
        $region35: #{tpu_custom_call.1} parent=15 // pred_region
          %p434 = scmp.lt.s32.totalorder %s30, 2
          %s435 = scalar_select %p434, %s30, 2
          %s436 = smul.addr %s435, 2
          %s437 = smul.addr %s436, 4
          %s438 = scalar_lea.vmem %s4, %s437
        $region36: #{tpu_custom_call.1} parent=15 // pred_fallthru
          _
        // Predicated region
        $region37: #{tpu_custom_call.1} parent=15 // pred_check
          %p439 = pneg %p180
        $region38: #{tpu_custom_call.1} parent=15 // pred_check_branch
          %441 = sbr.rel (%p439) target = $region40
        $region39: #{tpu_custom_call.1} parent=15 // pred_region
          %p442 = scmp.lt.s32.totalorder %s30, 2
          %s443 = scalar_select %p442, %s30, 2
          %s444 = smul.addr %s443, 16
          %s445 = smul.addr %s444, 4
          %s446 = scalar_lea.vmem %s5, %s445
        $region40: #{tpu_custom_call.1} parent=15 // pred_fallthru
          _
        // Predicated region
        $region41: #{tpu_custom_call.1} parent=15 // pred_check
          %p447 = pneg %p206
        $region42: #{tpu_custom_call.1} parent=15 // pred_check_branch
          %449 = sbr.rel (%p447) target = $region44
        $region43: #{tpu_custom_call.1} parent=15 // pred_region
          %p450 = scmp.lt.s32.totalorder %s30, 2
          %s451 = scalar_select %p450, %s30, 2
          %s452 = scalar_lea.vmem %s6, %s451
        $region44: #{tpu_custom_call.1} parent=15 // pred_fallthru
          _
        // Predicated region
        $region45: #{tpu_custom_call.1} parent=15 // pred_check
          %p453 = pneg %p232
        $region46: #{tpu_custom_call.1} parent=15 // pred_check_branch
          %455 = sbr.rel (%p453) target = $region48
        $region47: #{tpu_custom_call.1} parent=15 // pred_region
          %p456 = scmp.lt.s32.totalorder %s30, 2
          %s457 = scalar_select %p456, %s30, 2
          %s458 = scalar_lea.vmem %s7, %s457
        $region48: #{tpu_custom_call.1} parent=15 // pred_fallthru
          _
        // Predicated region
        $region49: #{tpu_custom_call.1} parent=15 // pred_check
          %p459 = pneg %p258
        $region50: #{tpu_custom_call.1} parent=15 // pred_check_branch
          %461 = sbr.rel (%p459) target = $region52
        $region51: #{tpu_custom_call.1} parent=15 // pred_region
          %p462 = scmp.lt.s32.totalorder %s30, 2
          %s463 = scalar_select %p462, %s30, 2
          %s464 = smul.addr %s463, 16
          %s465 = smul.addr %s464, 4
          %s466 = scalar_lea.vmem %s8, %s465
        $region52: #{tpu_custom_call.1} parent=15 // pred_fallthru
          _
        // Predicated region
        $region53: #{tpu_custom_call.1} parent=15 // pred_check
          %p467 = pneg %p284
        $region54: #{tpu_custom_call.1} parent=15 // pred_check_branch
          %469 = sbr.rel (%p467) target = $region56
        $region55: #{tpu_custom_call.1} parent=15 // pred_region
          %p470 = scmp.lt.s32.totalorder %s30, 2
          %s471 = scalar_select %p470, %s30, 2
          %s472 = scalar_lea.vmem %s9, %s471
        $region56: #{tpu_custom_call.1} parent=15 // pred_fallthru
          _
      $region16: #{tpu_custom_call.1} parent=5 // pred_fallthru
        _
      %p473 = scmp.le.s32.totalorder 1, %s30
      %p474 = scmp.lt.s32.totalorder %s30, 4
      %p475 = pnand %p473, %p474
      %p476 = pneg %p475
      // Predicated region
      $region57: #{tpu_custom_call.1} parent=5 // pred_check
        _
      $region58: #{tpu_custom_call.1} parent=5 // pred_check_branch
        %478 = sbr.rel (%p475) target = $region60
      $region59: #{tpu_custom_call.1} parent=5 // pred_region
        %s479 = ssub.s32 %s30, 1
        %s480 = sand.u32 %s43, 1
        %s481 = scalar_lea.sflag [#allocation4], %s480
        %s482 = sand.u32 %s43, 1
        %s483 = smul.addr %s482, 32
        %s484 = scalar_lea.vmem [#allocation3], %s483
        // Predicated region
        $region61: #{tpu_custom_call.1} parent=59 // pred_check
          %p485 = pneg %p56
        $region62: #{tpu_custom_call.1} parent=59 // pred_check_branch
          %487 = sbr.rel (%p485) target = $region64
        $region63: #{tpu_custom_call.1} parent=59 // pred_region
          %488 = dma.done %s481, 512
        $region64: #{tpu_custom_call.1} parent=59 // pred_fallthru
          _
        %s489 = sand.u32 %s35, 1
        %s490 = scalar_lea.sflag [#allocation7], %s489
        %s491 = sand.u32 %s69, 1
        %s492 = smul.addr %s491, 32
        %s493 = scalar_lea.vmem [#allocation6], %s492
        // Predicated region
        $region65: #{tpu_custom_call.1} parent=59 // pred_check
          %p494 = pneg %p82
        $region66: #{tpu_custom_call.1} parent=59 // pred_check_branch
          %496 = sbr.rel (%p494) target = $region68
        $region67: #{tpu_custom_call.1} parent=59 // pred_region
          %497 = dma.done %s490, 512
        $region68: #{tpu_custom_call.1} parent=59 // pred_fallthru
          _
        %s498 = sand.u32 %s35, 1
        %s499 = scalar_lea.sflag [#allocation7], %s498
        %s500 = sand.u32 %s121, 1
        %s501 = smul.addr %s500, 128
        %s502 = scalar_lea.vmem [#allocation8], %s501
        // Predicated region
        $region69: #{tpu_custom_call.1} parent=59 // pred_check
          %p503 = pneg %p134
        $region70: #{tpu_custom_call.1} parent=59 // pred_check_branch
          %505 = sbr.rel (%p503) target = $region72
        $region71: #{tpu_custom_call.1} parent=59 // pred_region
          %506 = dma.done %s499, 2048
        $region72: #{tpu_custom_call.1} parent=59 // pred_fallthru
          _
        %s507 = sand.u32 %s43, 1
        %s508 = scalar_lea.sflag [#allocation4], %s507
        %s509 = sand.u32 %s43, 1
        %s510 = smul.addr %s509, 32
        %s511 = scalar_lea.vmem [#allocation3], %s510
        %p512 = pneg %p56
        %p513 = pneg %p53
        %s514 = sand.u32 %s35, 1
        %s515 = scalar_lea.sflag [#allocation7], %s514
        %s516 = sand.u32 %s69, 1
        %s517 = smul.addr %s516, 32
        %s518 = scalar_lea.vmem [#allocation6], %s517
        %p519 = pneg %p82
        %p520 = pneg %p79
        %p521 = scmp.lt.s32.totalorder %s35, 2
        %s522 = scalar_select %p521, %s35, 2
        %s523 = smul.addr %s522, 2
        %s524 = scalar_lea.vmem %s2, %s523
        %p525 = pneg %p108
        %p526 = pneg %p105
        %s527 = sand.u32 %s35, 1
        %s528 = scalar_lea.sflag [#allocation7], %s527
        %s529 = sand.u32 %s121, 1
        %s530 = smul.addr %s529, 128
        %s531 = scalar_lea.vmem [#allocation8], %s530
        %p532 = pneg %p134
        %p533 = pneg %p131
        %p534 = scmp.lt.s32.totalorder %s35, 2
        %s535 = scalar_select %p534, %s35, 2
        %s536 = smul.addr %s535, 2
        %s537 = smul.addr %s536, 4
        %s538 = scalar_lea.vmem %s4, %s537
        %p539 = pneg %p160
        %p540 = pneg %p157
        %p541 = scmp.lt.s32.totalorder %s35, 2
        %s542 = scalar_select %p541, %s35, 2
        %s543 = smul.addr %s542, 16
        %s544 = smul.addr %s543, 4
        %s545 = scalar_lea.vmem %s5, %s544
        %p546 = pneg %p186
        %p547 = pneg %p183
        %p548 = scmp.lt.s32.totalorder %s35, 2
        %s549 = scalar_select %p548, %s35, 2
        %s550 = scalar_lea.vmem %s6, %s549
        %p551 = pneg %p212
        %p552 = pneg %p209
        %p553 = scmp.lt.s32.totalorder %s35, 2
        %s554 = scalar_select %p553, %s35, 2
        %s555 = scalar_lea.vmem %s7, %s554
        %p556 = pneg %p238
        %p557 = pneg %p235
        %p558 = scmp.lt.s32.totalorder %s35, 2
        %s559 = scalar_select %p558, %s35, 2
        %s560 = smul.addr %s559, 16
        %s561 = smul.addr %s560, 4
        %s562 = scalar_lea.vmem %s8, %s561
        %p563 = pneg %p264
        %p564 = pneg %p261
        %p565 = scmp.lt.s32.totalorder %s35, 2
        %s566 = scalar_select %p565, %s35, 2
        %s567 = scalar_lea.vmem %s9, %s566
        %p568 = pneg %p290
        %p569 = pneg %p287
        %p570 = pneg %p316
        %p571 = pneg %p313
        %s572 = sand.u32 %s303, 1
        %s573 = scalar_lea.sflag [#allocation5], %s572
        %s574 = sand.u32 %s303, 1
        %s575 = smul.addr %s574, 8
        %s576 = scalar_lea.vmem [#allocation9], %s575
        %p577 = pneg %p342
        %p578 = pneg %p339
        %s579 = sand.u32 %s329, 1
        %s580 = scalar_lea.sflag [#allocation11], %s579
        %s581 = sand.u32 %s329, 1
        %s582 = smul.addr %s581, 8
        %s583 = scalar_lea.vmem [#allocation10], %s582
        %p584 = scmp.lt.s32.totalorder %s35, 2
        %s585 = scalar_select %p584, %s35, 2
        %s586 = smul.addr %s585, 2
        %s587 = scalar_lea.vmem %s2, %s586
        %p588 = scmp.lt.s32.totalorder %s35, 2
        %s589 = scalar_select %p588, %s35, 2
        %s590 = smul.addr %s589, 2
        %s591 = smul.addr %s590, 4
        %s592 = scalar_lea.vmem %s4, %s591
        %p593 = scmp.lt.s32.totalorder %s35, 2
        %s594 = scalar_select %p593, %s35, 2
        %s595 = smul.addr %s594, 16
        %s596 = smul.addr %s595, 4
        %s597 = scalar_lea.vmem %s5, %s596
        %p598 = scmp.lt.s32.totalorder %s35, 2
        %s599 = scalar_select %p598, %s35, 2
        %s600 = scalar_lea.vmem %s6, %s599
        %p601 = scmp.lt.s32.totalorder %s35, 2
        %s602 = scalar_select %p601, %s35, 2
        %s603 = scalar_lea.vmem %s7, %s602
        %p604 = scmp.lt.s32.totalorder %s35, 2
        %s605 = scalar_select %p604, %s35, 2
        %s606 = smul.addr %s605, 16
        %s607 = smul.addr %s606, 4
        %s608 = scalar_lea.vmem %s8, %s607
        %p609 = scmp.lt.s32.totalorder %s35, 2
        %s610 = scalar_select %p609, %s35, 2
        %s611 = scalar_lea.vmem %s9, %s610
        %v613 = vld [vmem:[%s484] sm:$0xf]
        %v614 = vld [vmem:[%s484 + $0x4] sm:$0xf]
        %v615 = vld [vmem:[%s484 + $0x8] sm:$0xf]
        %v616 = vld [vmem:[%s484 + $0xc] sm:$0xf]
        %v617 = vld [vmem:[%s493] sm:$0xf]
        %v618 = vld [vmem:[%s493 + $0x4] sm:$0xf]
        %v619 = vld [vmem:[%s493 + $0x8] sm:$0xf]
        %v620 = vld [vmem:[%s493 + $0xc] sm:$0xf]
        %v621 = vld [vmem:[%s587] sm:$0x1]
        %v623 = vlaneseq
        %v624 = vshrl.u32 %v623, 7
        %v625 = vsub.s32 0, %v624
        %v626 = vrot.slane %v621, %v625
        %v632 = vunpack.c.l.b16 %v613
        %v633 = vunpack.c.l.b16 %v614
        %v634 = vunpack.c.l.b16 %v615
        %v635 = vunpack.c.l.b16 %v616
        %v636 = vpack.c.b16 %v633, %v632
        %v637 = vpack.c.b16 %v635, %v634
        %v642 = vunpack.c.l.b16 %v617
        %v643 = vunpack.c.l.b16 %v618
        %v644 = vunpack.c.l.b16 %v619
        %v645 = vunpack.c.l.b16 %v620
        %v646 = vpack.c.b16 %v643, %v642
        %v647 = vpack.c.b16 %v645, %v644
        %vm650 = vcmask 261120
        %v652 = vsel %vm650, %v636, 0
        %v655 = vsel %vm650, %v637, 0
        %657 = vmatprep.subr.bf16.mxu0 0
        %658 = vmatpush1.bf16.msra.mxu0 %v646
        %659 = vmatprep.subr.bf16.mxu0 0
        %660 = vmatpush1.bf16.msra.mxu0 %v647
        %661 = vmatprep.subr.bf16.mxu0 0
        %662 = vmatpush1.bf16.msra.mxu0 0
        %663 = vmatprep.subr.bf16.mxu0 0
        %664 = vmatpush1.bf16.msra.mxu0 0
        %665 = vmatprep.subr.bf16.mxu0 0
        %666 = vmatpush1.bf16.msra.mxu0 0
        %667 = vmatprep.subr.bf16.mxu0 0
        %668 = vmatpush1.bf16.msra.mxu0 0
        %669 = vmatprep.subr.bf16.mxu0 0
        %670 = vmatpush1.bf16.msra.mxu0 0
        %671 = vmatprep.subr.bf16.mxu0 0
        %672 = vmatpush1.bf16.msra.mxu0 0
        %673 = vmatprep.subr.bf16.mxu0 0
        %674 = vmatpush1.bf16.msra.mxu0 0
        %675 = vmatprep.subr.bf16.mxu0 0
        %676 = vmatpush1.bf16.msra.mxu0 0
        %677 = vmatprep.subr.bf16.mxu0 0
        %678 = vmatpush1.bf16.msra.mxu0 0
        %679 = vmatprep.subr.bf16.mxu0 0
        %680 = vmatpush1.bf16.msra.mxu0 0
        %681 = vmatprep.subr.bf16.mxu0 0
        %682 = vmatpush1.bf16.msra.mxu0 0
        %683 = vmatprep.subr.bf16.mxu0 0
        %684 = vmatpush1.bf16.msra.mxu0 0
        %685 = vmatprep.subr.bf16.mxu0 0
        %686 = vmatpush1.bf16.msra.mxu0 0
        %687 = vmatprep.subr.bf16.mxu0 0
        %688 = vmatpush1.bf16.msra.mxu0 0
        %689 = vmatprep.mubr.bf16.mxu0 0
        %690 = vmatmul.mubr.bf16.gmra.mrb[0].mxu0 %v652
        %v691 = vpop.f32.mrb[0].mxu0
        %v692 = vadd.f32 %v626, %v691
        %v693 = vpop.f32.mrb[0].mxu0
        %v694 = vpop.f32.mrb[0].mxu0
        %v695 = vadd.f32 %v626, %v694
        %v696 = vpop.f32.mrb[0].mxu0
        %697 = vmatprep.mubr.bf16.mxu0 0
        %698 = vmatmul.mubr.bf16.gmra.mrb[0].mxu0 %v655
        %v699 = vpop.f32.mrb[0].mxu0
        %v700 = vadd.f32 %v626, %v699
        %v701 = vpop.f32.mrb[0].mxu0
        %v702 = vpop.f32.mrb[0].mxu0
        %v703 = vadd.f32 %v626, %v702
        %v704 = vpop.f32.mrb[0].mxu0
        %705 = vdwg.mxu0
        %v706 = vpack.c.bf16 %v695, %v692
        %v707 = vpack.c.bf16 %v703, %v700
        %v708 = vld [vmem:[%s502] sm:$0xf]
        %v709 = vld [vmem:[%s502 + $0x4] sm:$0xf]
        %v710 = vld [vmem:[%s502 + $0x8] sm:$0xf]
        %v711 = vld [vmem:[%s502 + $0xc] sm:$0xf]
        %v712 = vld [vmem:[%s502 + $0x10] sm:$0xf]
        %v713 = vld [vmem:[%s502 + $0x14] sm:$0xf]
        %v714 = vld [vmem:[%s502 + $0x18] sm:$0xf]
        %v715 = vld [vmem:[%s502 + $0x1c] sm:$0xf]
        %v716 = vld [vmem:[%s502 + $0x20] sm:$0xf]
        %v717 = vld [vmem:[%s502 + $0x24] sm:$0xf]
        %v718 = vld [vmem:[%s502 + $0x28] sm:$0xf]
        %v719 = vld [vmem:[%s502 + $0x2c] sm:$0xf]
        %v720 = vld [vmem:[%s502 + $0x30] sm:$0xf]
        %v721 = vld [vmem:[%s502 + $0x34] sm:$0xf]
        %v722 = vld [vmem:[%s502 + $0x38] sm:$0xf]
        %v723 = vld [vmem:[%s502 + $0x3c] sm:$0xf]
        %v740 = vunpack.c.l.b16 %v708
        %v741 = vunpack.c.l.b16 %v709
        %v742 = vunpack.c.l.b16 %v710
        %v743 = vunpack.c.l.b16 %v711
        %v744 = vunpack.c.l.b16 %v712
        %v745 = vunpack.c.l.b16 %v713
        %v746 = vunpack.c.l.b16 %v714
        %v747 = vunpack.c.l.b16 %v715
        %v748 = vunpack.c.l.b16 %v716
        %v749 = vunpack.c.l.b16 %v717
        %v750 = vunpack.c.l.b16 %v718
        %v751 = vunpack.c.l.b16 %v719
        %v752 = vunpack.c.l.b16 %v720
        %v753 = vunpack.c.l.b16 %v721
        %v754 = vunpack.c.l.b16 %v722
        %v755 = vunpack.c.l.b16 %v723
        %v756 = vpack.c.b16 %v741, %v740
        %v757 = vpack.c.b16 %v743, %v742
        %v758 = vpack.c.b16 %v745, %v744
        %v759 = vpack.c.b16 %v747, %v746
        %v760 = vpack.c.b16 %v749, %v748
        %v761 = vpack.c.b16 %v751, %v750
        %v762 = vpack.c.b16 %v753, %v752
        %v763 = vpack.c.b16 %v755, %v754
        %772 = vmatprep.subr.bf16.mxu0 0
        %773 = vmatpush1.bf16.msra.mxu0 %v756
        %774 = vmatprep.subr.bf16.mxu0 0
        %775 = vmatpush1.bf16.msra.mxu0 %v757
        %776 = vmatprep.subr.bf16.mxu0 0
        %777 = vmatpush1.bf16.msra.mxu0 %v758
        %778 = vmatprep.subr.bf16.mxu0 0
        %779 = vmatpush1.bf16.msra.mxu0 %v759
        %780 = vmatprep.subr.bf16.mxu0 0
        %781 = vmatpush1.bf16.msra.mxu0 %v760
        %782 = vmatprep.subr.bf16.mxu0 0
        %783 = vmatpush1.bf16.msra.mxu0 %v761
        %784 = vmatprep.subr.bf16.mxu0 0
        %785 = vmatpush1.bf16.msra.mxu0 %v762
        %786 = vmatprep.subr.bf16.mxu0 0
        %787 = vmatpush1.bf16.msra.mxu0 %v763
        %788 = vmatprep.subr.bf16.mxu0 0
        %789 = vmatpush1.bf16.msra.mxu0 0
        %790 = vmatprep.subr.bf16.mxu0 0
        %791 = vmatpush1.bf16.msra.mxu0 0
        %792 = vmatprep.subr.bf16.mxu0 0
        %793 = vmatpush1.bf16.msra.mxu0 0
        %794 = vmatprep.subr.bf16.mxu0 0
        %795 = vmatpush1.bf16.msra.mxu0 0
        %796 = vmatprep.subr.bf16.mxu0 0
        %797 = vmatpush1.bf16.msra.mxu0 0
        %798 = vmatprep.subr.bf16.mxu0 0
        %799 = vmatpush1.bf16.msra.mxu0 0
        %800 = vmatprep.subr.bf16.mxu0 0
        %801 = vmatpush1.bf16.msra.mxu0 0
        %802 = vmatprep.subr.bf16.mxu0 0
        %803 = vmatpush1.bf16.msra.mxu0 0
        %804 = vmatprep.mubr.bf16.mxu0 0
        %805 = vmatmul.mubr.bf16.gmra.mrb[0].mxu0 %v706
        %v806 = vpop.f32.mrb[0].mxu0
        %v807 = vadd.f32 0.0, %v806
        %v808 = vpop.f32.mrb[0].mxu0
        %v809 = vpop.f32.mrb[0].mxu0
        %v810 = vadd.f32 0.0, %v809
        %v811 = vpop.f32.mrb[0].mxu0
        %812 = vmatprep.mubr.bf16.mxu0 0
        %813 = vmatmul.mubr.bf16.gmra.mrb[0].mxu0 %v707
        %v814 = vpop.f32.mrb[0].mxu0
        %v815 = vadd.f32 0.0, %v814
        %v816 = vpop.f32.mrb[0].mxu0
        %v817 = vpop.f32.mrb[0].mxu0
        %v818 = vadd.f32 0.0, %v817
        %v819 = vpop.f32.mrb[0].mxu0
        %820 = vdwg.mxu0
        %vm821 = vcmp.gt.f32.partialorder %v807, 0.0
        %vm822 = vcmp.gt.f32.partialorder %v810, 0.0
        %vm823 = vcmp.gt.f32.partialorder %v815, 0.0
        %vm824 = vcmp.gt.f32.partialorder %v818, 0.0
        %v825 = vmul.f32 %v807, 0.01
        %v826 = vmul.f32 %v810, 0.01
        %v827 = vmul.f32 %v815, 0.01
        %v828 = vmul.f32 %v818, 0.01
        %v829 = vsel %vm821, %v807, %v825
        %v830 = vsel %vm822, %v810, %v826
        %v831 = vsel %vm823, %v815, %v827
        %v832 = vsel %vm824, %v818, %v828
        %v833 = vmax.f32 %v829, %v830
        %v834 = vmax.f32 %v831, %v832
        %v835 = vmax.f32 %v833, %v834
        %v836 = vrot.slane %v835, 4
        %v837 = vmax.f32 %v835, %v836
        %v838 = vrot.slane %v837, 2
        %v839 = vmax.f32 %v837, %v838
        %v840 = vrot.slane %v839, 1
        %v841 = vmax.f32 %v839, %v840
        %v842 = vsub.f32 %v829, %v841
        %v843 = vsub.f32 %v830, %v841
        %v844 = vsub.f32 %v831, %v841
        %v845 = vsub.f32 %v832, %v841
        %v846 = vmul.f32 %v842, 1.442695
        %v847 = vpow.pop %v846
        %v848 = vmul.f32 %v843, 1.442695
        %v849 = vpow.pop %v848
        %v850 = vmul.f32 %v844, 1.442695
        %v851 = vpow.pop %v850
        %v852 = vmul.f32 %v845, 1.442695
        %v853 = vpow.pop %v852
        %v854 = vmul.f32 %v692, %v847
        %v855 = vmul.f32 %v695, %v849
        %v856 = vmul.f32 %v700, %v851
        %v857 = vmul.f32 %v703, %v853
        %v858 = vpack.c.bf16 %v855, %v854
        %v859 = vpack.c.bf16 %v857, %v856
        %860 = vst [vmem:[#allocation2] sm:$0xff] %v858
        %861 = vst [vmem:[#allocation2 + $0x10] sm:$0xff] %v859
        %v862 = vpack.c.bf16 %v849, %v847
        %v863 = vpack.c.bf16 %v853, %v851
        %864 = vst [vmem:[#allocation2 + $0x8] sm:$0xff] %v862
        %865 = vst [vmem:[#allocation2 + $0x18] sm:$0xff] %v863
        %v866 = vld [vmem:[%s592] sm:$0xf]
        %v867 = vld [vmem:[#allocation2] sm:$0xff]
        %v868 = vld [vmem:[#allocation2 + $0x8] sm:$0xff]
        %v869 = vld [vmem:[#allocation2 + $0x10] sm:$0xff]
        %v870 = vld [vmem:[#allocation2 + $0x18] sm:$0xff]
        %v872 = vsel %vm650, %v866, 0
        %874 = vmatprep.subr.bf16.mxu0 %v868
        %875 = vmatpush1.bf16.msra.mxu0 %v867
        %876 = vmatprep.subr.bf16.mxu0 %v870
        %877 = vmatpush1.bf16.msra.mxu0 %v869
        %878 = vmatprep.subr.bf16.mxu0 0
        %879 = vmatpush1.bf16.msra.mxu0 0
        %880 = vmatprep.subr.bf16.mxu0 0
        %881 = vmatpush1.bf16.msra.mxu0 0
        %882 = vmatprep.subr.bf16.mxu0 0
        %883 = vmatpush1.bf16.msra.mxu0 0
        %884 = vmatprep.subr.bf16.mxu0 0
        %885 = vmatpush1.bf16.msra.mxu0 0
        %886 = vmatprep.subr.bf16.mxu0 0
        %887 = vmatpush1.bf16.msra.mxu0 0
        %888 = vmatprep.subr.bf16.mxu0 0
        %889 = vmatpush1.bf16.msra.mxu0 0
        %890 = vmatprep.subr.bf16.mxu0 0
        %891 = vmatpush1.bf16.msra.mxu0 0
        %892 = vmatprep.subr.bf16.mxu0 0
        %893 = vmatpush1.bf16.msra.mxu0 0
        %894 = vmatprep.subr.bf16.mxu0 0
        %895 = vmatpush1.bf16.msra.mxu0 0
        %896 = vmatprep.subr.bf16.mxu0 0
        %897 = vmatpush1.bf16.msra.mxu0 0
        %898 = vmatprep.subr.bf16.mxu0 0
        %899 = vmatpush1.bf16.msra.mxu0 0
        %900 = vmatprep.subr.bf16.mxu0 0
        %901 = vmatpush1.bf16.msra.mxu0 0
        %902 = vmatprep.subr.bf16.mxu0 0
        %903 = vmatpush1.bf16.msra.mxu0 0
        %904 = vmatprep.subr.bf16.mxu0 0
        %905 = vmatpush1.bf16.msra.mxu0 0
        %906 = vmatprep.mubr.bf16.mxu0 0
        %907 = vmatmul.mubr.bf16.gmra.mrb[0].mxu0 %v872
        %v908 = vpop.f32.mrb[0].mxu0
        %v909 = vadd.f32 0.0, %v908
        %v910 = vpop.f32.mrb[0].mxu0
        %v911 = vadd.f32 0.0, %v910
        %v912 = vpop.f32.mrb[0].mxu0
        %v913 = vpop.f32.mrb[0].mxu0
        %914 = vdwg.mxu0
        %vm915 = vcmp.le.f32.partialorder %v911, 0.0
        %v916 = vsel %vm915, 1.0, %v911
        %v917 = vrcp.pop %v916
        %v918 = vmul.f32 %v909, %v917
        %vm919 = vcmp.gt.f32.partialorder %v918, 0.0
        %v920 = vmin.f32 %v918, 0.0
        %v921 = vmul.f32 %v920, 1.442695
        %v922 = vpow.pop %v921
        %v923 = vsub.f32 %v922, 1.0
        %v924 = vsel %vm919, %v918, %v923
        %v925 = vpack.c.bf16 %v924, %v924
        %v926 = vld [vmem:[%s597] sm:$0xf]
        %v927 = vld [vmem:[%s597 + $0x4] sm:$0xf]
        %v928 = vld [vmem:[%s597 + $0x8] sm:$0xf]
        %v929 = vld [vmem:[%s597 + $0xc] sm:$0xf]
        %v930 = vld [vmem:[%s597 + $0x10] sm:$0xf]
        %v931 = vld [vmem:[%s597 + $0x14] sm:$0xf]
        %v932 = vld [vmem:[%s597 + $0x18] sm:$0xf]
        %v933 = vld [vmem:[%s597 + $0x1c] sm:$0xf]
        %v934 = vld [vmem:[%s597 + $0x20] sm:$0xf]
        %v935 = vld [vmem:[%s597 + $0x24] sm:$0xf]
        %v936 = vld [vmem:[%s597 + $0x28] sm:$0xf]
        %v937 = vld [vmem:[%s597 + $0x2c] sm:$0xf]
        %v938 = vld [vmem:[%s597 + $0x30] sm:$0xf]
        %v939 = vld [vmem:[%s597 + $0x34] sm:$0xf]
        %v940 = vld [vmem:[%s597 + $0x38] sm:$0xf]
        %v941 = vld [vmem:[%s597 + $0x3c] sm:$0xf]
        %v942 = vld [vmem:[%s600] sm:$0x1]
        %v944 = vlaneseq
        %v945 = vshrl.u32 %v944, 7
        %v946 = vsub.s32 0, %v945
        %v947 = vrot.slane %v942, %v946
        %v965 = vunpack.c.l.b16 %v926
        %v966 = vunpack.c.l.b16 %v927
        %v967 = vunpack.c.l.b16 %v928
        %v968 = vunpack.c.l.b16 %v929
        %v969 = vunpack.c.l.b16 %v930
        %v970 = vunpack.c.l.b16 %v931
        %v971 = vunpack.c.l.b16 %v932
        %v972 = vunpack.c.l.b16 %v933
        %v973 = vunpack.c.l.b16 %v934
        %v974 = vunpack.c.l.b16 %v935
        %v975 = vunpack.c.l.b16 %v936
        %v976 = vunpack.c.l.b16 %v937
        %v977 = vunpack.c.l.b16 %v938
        %v978 = vunpack.c.l.b16 %v939
        %v979 = vunpack.c.l.b16 %v940
        %v980 = vunpack.c.l.b16 %v941
        %v981 = vpack.c.b16 %v966, %v965
        %v982 = vpack.c.b16 %v968, %v967
        %v983 = vpack.c.b16 %v970, %v969
        %v984 = vpack.c.b16 %v972, %v971
        %v985 = vpack.c.b16 %v974, %v973
        %v986 = vpack.c.b16 %v976, %v975
        %v987 = vpack.c.b16 %v978, %v977
        %v988 = vpack.c.b16 %v980, %v979
        %997 = vmatprep.subr.bf16.mxu0 0
        %998 = vmatpush1.bf16.msra.mxu0 %v981
        %999 = vmatprep.subr.bf16.mxu0 0
        %1000 = vmatpush1.bf16.msra.mxu0 %v982
        %1001 = vmatprep.subr.bf16.mxu0 0
        %1002 = vmatpush1.bf16.msra.mxu0 %v983
        %1003 = vmatprep.subr.bf16.mxu0 0
        %1004 = vmatpush1.bf16.msra.mxu0 %v984
        %1005 = vmatprep.subr.bf16.mxu0 0
        %1006 = vmatpush1.bf16.msra.mxu0 %v985
        %1007 = vmatprep.subr.bf16.mxu0 0
        %1008 = vmatpush1.bf16.msra.mxu0 %v986
        %1009 = vmatprep.subr.bf16.mxu0 0
        %1010 = vmatpush1.bf16.msra.mxu0 %v987
        %1011 = vmatprep.subr.bf16.mxu0 0
        %1012 = vmatpush1.bf16.msra.mxu0 %v988
        %1013 = vmatprep.subr.bf16.mxu0 0
        %1014 = vmatpush1.bf16.msra.mxu0 0
        %1015 = vmatprep.subr.bf16.mxu0 0
        %1016 = vmatpush1.bf16.msra.mxu0 0
        %1017 = vmatprep.subr.bf16.mxu0 0
        %1018 = vmatpush1.bf16.msra.mxu0 0
        %1019 = vmatprep.subr.bf16.mxu0 0
        %1020 = vmatpush1.bf16.msra.mxu0 0
        %1021 = vmatprep.subr.bf16.mxu0 0
        %1022 = vmatpush1.bf16.msra.mxu0 0
        %1023 = vmatprep.subr.bf16.mxu0 0
        %1024 = vmatpush1.bf16.msra.mxu0 0
        %1025 = vmatprep.subr.bf16.mxu0 0
        %1026 = vmatpush1.bf16.msra.mxu0 0
        %1027 = vmatprep.subr.bf16.mxu0 0
        %1028 = vmatpush1.bf16.msra.mxu0 0
        %1029 = vmatprep.mubr.bf16.mxu0 0
        %1030 = vmatmul.mubr.bf16.gmra.mrb[0].mxu0 %v925
        %v1031 = vpop.f32.mrb[0].mxu0
        %v1032 = vadd.f32 %v947, %v1031
        %v1033 = vpop.f32.mrb[0].mxu0
        %v1034 = vpop.f32.mrb[0].mxu0
        %v1035 = vpop.f32.mrb[0].mxu0
        %1036 = vdwg.mxu0
        %v1037 = vtanh.pop %v1032
        %vm1038 = vcmask 130048
        %v1039 = vsel %vm1038, %v1037, 0.0
        %v1040 = vrot.slane %v1039, 4
        %v1041 = vadd.f32 %v1039, %v1040
        %v1042 = vrot.slane %v1041, 2
        %v1043 = vadd.f32 %v1041, %v1042
        %v1044 = vrot.slane %v1043, 1
        %v1045 = vadd.f32 %v1043, %v1044
        %v1046 = vrcp.pop 8.0
        %v1047 = vmul.f32 %v1045, %v1046
        %v1048 = vld [vmem:[%s603] sm:$0x1]
        %v1049 = vmul.f32 %v1047, %v1048
        %vm1050 = vcmask 122880
        %v1051 = vsel %vm1050, %v1049, 0.0
        %1052 = vadd.xlane.f32.xlu0 %v1051
        %v1053 = vpop.xlane.xlu0 %1052
        %s1054 = scalar_lea.vmem %s484, 16 [#allocation3]
        %v1055 = vld [vmem:[%s1054] sm:$0xf]
        %v1056 = vld [vmem:[%s1054 + $0x4] sm:$0xf]
        %v1057 = vld [vmem:[%s1054 + $0x8] sm:$0xf]
        %v1058 = vld [vmem:[%s1054 + $0xc] sm:$0xf]
        %s1059 = scalar_lea.vmem %s493, 16 [#allocation6]
        %v1060 = vld [vmem:[%s1059] sm:$0xf]
        %v1061 = vld [vmem:[%s1059 + $0x4] sm:$0xf]
        %v1062 = vld [vmem:[%s1059 + $0x8] sm:$0xf]
        %v1063 = vld [vmem:[%s1059 + $0xc] sm:$0xf]
        %s1064 = scalar_lea.vmem %s587, 1
        %v1065 = vld [vmem:[%s1064] sm:$0x1]
        %v1067 = vlaneseq
        %v1068 = vshrl.u32 %v1067, 7
        %v1069 = vsub.s32 0, %v1068
        %v1070 = vrot.slane %v1065, %v1069
        %v1076 = vunpack.c.l.b16 %v1055
        %v1077 = vunpack.c.l.b16 %v1056
        %v1078 = vunpack.c.l.b16 %v1057
        %v1079 = vunpack.c.l.b16 %v1058
        %v1080 = vpack.c.b16 %v1077, %v1076
        %v1081 = vpack.c.b16 %v1079, %v1078
        %v1086 = vunpack.c.l.b16 %v1060
        %v1087 = vunpack.c.l.b16 %v1061
        %v1088 = vunpack.c.l.b16 %v1062
        %v1089 = vunpack.c.l.b16 %v1063
        %v1090 = vpack.c.b16 %v1087, %v1086
        %v1091 = vpack.c.b16 %v1089, %v1088
        %v1095 = vsel %vm650, %v1080, 0
        %v1098 = vsel %vm650, %v1081, 0
        %1100 = vmatprep.subr.bf16.mxu0 0
        %1101 = vmatpush1.bf16.msra.mxu0 %v1090
        %1102 = vmatprep.subr.bf16.mxu0 0
        %1103 = vmatpush1.bf16.msra.mxu0 %v1091
        %1104 = vmatprep.subr.bf16.mxu0 0
        %1105 = vmatpush1.bf16.msra.mxu0 0
        %1106 = vmatprep.subr.bf16.mxu0 0
        %1107 = vmatpush1.bf16.msra.mxu0 0
        %1108 = vmatprep.subr.bf16.mxu0 0
        %1109 = vmatpush1.bf16.msra.mxu0 0
        %1110 = vmatprep.subr.bf16.mxu0 0
        %1111 = vmatpush1.bf16.msra.mxu0 0
        %1112 = vmatprep.subr.bf16.mxu0 0
        %1113 = vmatpush1.bf16.msra.mxu0 0
        %1114 = vmatprep.subr.bf16.mxu0 0
        %1115 = vmatpush1.bf16.msra.mxu0 0
        %1116 = vmatprep.subr.bf16.mxu0 0
        %1117 = vmatpush1.bf16.msra.mxu0 0
        %1118 = vmatprep.subr.bf16.mxu0 0
        %1119 = vmatpush1.bf16.msra.mxu0 0
        %1120 = vmatprep.subr.bf16.mxu0 0
        %1121 = vmatpush1.bf16.msra.mxu0 0
        %1122 = vmatprep.subr.bf16.mxu0 0
        %1123 = vmatpush1.bf16.msra.mxu0 0
        %1124 = vmatprep.subr.bf16.mxu0 0
        %1125 = vmatpush1.bf16.msra.mxu0 0
        %1126 = vmatprep.subr.bf16.mxu0 0
        %1127 = vmatpush1.bf16.msra.mxu0 0
        %1128 = vmatprep.subr.bf16.mxu0 0
        %1129 = vmatpush1.bf16.msra.mxu0 0
        %1130 = vmatprep.subr.bf16.mxu0 0
        %1131 = vmatpush1.bf16.msra.mxu0 0
        %1132 = vmatprep.mubr.bf16.mxu0 0
        %1133 = vmatmul.mubr.bf16.gmra.mrb[0].mxu0 %v1095
        %v1134 = vpop.f32.mrb[0].mxu0
        %v1135 = vadd.f32 %v1070, %v1134
        %v1136 = vpop.f32.mrb[0].mxu0
        %v1137 = vpop.f32.mrb[0].mxu0
        %v1138 = vadd.f32 %v1070, %v1137
        %v1139 = vpop.f32.mrb[0].mxu0
        %1140 = vmatprep.mubr.bf16.mxu0 0
        %1141 = vmatmul.mubr.bf16.gmra.mrb[0].mxu0 %v1098
        %v1142 = vpop.f32.mrb[0].mxu0
        %v1143 = vadd.f32 %v1070, %v1142
        %v1144 = vpop.f32.mrb[0].mxu0
        %v1145 = vpop.f32.mrb[0].mxu0
        %v1146 = vadd.f32 %v1070, %v1145
        %v1147 = vpop.f32.mrb[0].mxu0
        %1148 = vdwg.mxu0
        %v1149 = vpack.c.bf16 %v1138, %v1135
        %v1150 = vpack.c.bf16 %v1146, %v1143
        %s1151 = scalar_lea.vmem %s502, 64 [#allocation8]
        %v1152 = vld [vmem:[%s1151] sm:$0xf]
        %v1153 = vld [vmem:[%s1151 + $0x4] sm:$0xf]
        %v1154 = vld [vmem:[%s1151 + $0x8] sm:$0xf]
        %v1155 = vld [vmem:[%s1151 + $0xc] sm:$0xf]
        %v1156 = vld [vmem:[%s1151 + $0x10] sm:$0xf]
        %v1157 = vld [vmem:[%s1151 + $0x14] sm:$0xf]
        %v1158 = vld [vmem:[%s1151 + $0x18] sm:$0xf]
        %v1159 = vld [vmem:[%s1151 + $0x1c] sm:$0xf]
        %v1160 = vld [vmem:[%s1151 + $0x20] sm:$0xf]
        %v1161 = vld [vmem:[%s1151 + $0x24] sm:$0xf]
        %v1162 = vld [vmem:[%s1151 + $0x28] sm:$0xf]
        %v1163 = vld [vmem:[%s1151 + $0x2c] sm:$0xf]
        %v1164 = vld [vmem:[%s1151 + $0x30] sm:$0xf]
        %v1165 = vld [vmem:[%s1151 + $0x34] sm:$0xf]
        %v1166 = vld [vmem:[%s1151 + $0x38] sm:$0xf]
        %v1167 = vld [vmem:[%s1151 + $0x3c] sm:$0xf]
        %v1184 = vunpack.c.l.b16 %v1152
        %v1185 = vunpack.c.l.b16 %v1153
        %v1186 = vunpack.c.l.b16 %v1154
        %v1187 = vunpack.c.l.b16 %v1155
        %v1188 = vunpack.c.l.b16 %v1156
        %v1189 = vunpack.c.l.b16 %v1157
        %v1190 = vunpack.c.l.b16 %v1158
        %v1191 = vunpack.c.l.b16 %v1159
        %v1192 = vunpack.c.l.b16 %v1160
        %v1193 = vunpack.c.l.b16 %v1161
        %v1194 = vunpack.c.l.b16 %v1162
        %v1195 = vunpack.c.l.b16 %v1163
        %v1196 = vunpack.c.l.b16 %v1164
        %v1197 = vunpack.c.l.b16 %v1165
        %v1198 = vunpack.c.l.b16 %v1166
        %v1199 = vunpack.c.l.b16 %v1167
        %v1200 = vpack.c.b16 %v1185, %v1184
        %v1201 = vpack.c.b16 %v1187, %v1186
        %v1202 = vpack.c.b16 %v1189, %v1188
        %v1203 = vpack.c.b16 %v1191, %v1190
        %v1204 = vpack.c.b16 %v1193, %v1192
        %v1205 = vpack.c.b16 %v1195, %v1194
        %v1206 = vpack.c.b16 %v1197, %v1196
        %v1207 = vpack.c.b16 %v1199, %v1198
        %1216 = vmatprep.subr.bf16.mxu0 0
        %1217 = vmatpush1.bf16.msra.mxu0 %v1200
        %1218 = vmatprep.subr.bf16.mxu0 0
        %1219 = vmatpush1.bf16.msra.mxu0 %v1201
        %1220 = vmatprep.subr.bf16.mxu0 0
        %1221 = vmatpush1.bf16.msra.mxu0 %v1202
        %1222 = vmatprep.subr.bf16.mxu0 0
        %1223 = vmatpush1.bf16.msra.mxu0 %v1203
        %1224 = vmatprep.subr.bf16.mxu0 0
        %1225 = vmatpush1.bf16.msra.mxu0 %v1204
        %1226 = vmatprep.subr.bf16.mxu0 0
        %1227 = vmatpush1.bf16.msra.mxu0 %v1205
        %1228 = vmatprep.subr.bf16.mxu0 0
        %1229 = vmatpush1.bf16.msra.mxu0 %v1206
        %1230 = vmatprep.subr.bf16.mxu0 0
        %1231 = vmatpush1.bf16.msra.mxu0 %v1207
        %1232 = vmatprep.subr.bf16.mxu0 0
        %1233 = vmatpush1.bf16.msra.mxu0 0
        %1234 = vmatprep.subr.bf16.mxu0 0
        %1235 = vmatpush1.bf16.msra.mxu0 0
        %1236 = vmatprep.subr.bf16.mxu0 0
        %1237 = vmatpush1.bf16.msra.mxu0 0
        %1238 = vmatprep.subr.bf16.mxu0 0
        %1239 = vmatpush1.bf16.msra.mxu0 0
        %1240 = vmatprep.subr.bf16.mxu0 0
        %1241 = vmatpush1.bf16.msra.mxu0 0
        %1242 = vmatprep.subr.bf16.mxu0 0
        %1243 = vmatpush1.bf16.msra.mxu0 0
        %1244 = vmatprep.subr.bf16.mxu0 0
        %1245 = vmatpush1.bf16.msra.mxu0 0
        %1246 = vmatprep.subr.bf16.mxu0 0
        %1247 = vmatpush1.bf16.msra.mxu0 0
        %1248 = vmatprep.mubr.bf16.mxu0 0
        %1249 = vmatmul.mubr.bf16.gmra.mrb[0].mxu0 %v1149
        %v1250 = vpop.f32.mrb[0].mxu0
        %v1251 = vadd.f32 0.0, %v1250
        %v1252 = vpop.f32.mrb[0].mxu0
        %v1253 = vpop.f32.mrb[0].mxu0
        %v1254 = vadd.f32 0.0, %v1253
        %v1255 = vpop.f32.mrb[0].mxu0
        %1256 = vmatprep.mubr.bf16.mxu0 0
        %1257 = vmatmul.mubr.bf16.gmra.mrb[0].mxu0 %v1150
        %v1258 = vpop.f32.mrb[0].mxu0
        %v1259 = vadd.f32 0.0, %v1258
        %v1260 = vpop.f32.mrb[0].mxu0
        %v1261 = vpop.f32.mrb[0].mxu0
        %v1262 = vadd.f32 0.0, %v1261
        %v1263 = vpop.f32.mrb[0].mxu0
        %1264 = vdwg.mxu0
        %vm1265 = vcmp.gt.f32.partialorder %v1251, 0.0
        %vm1266 = vcmp.gt.f32.partialorder %v1254, 0.0
        %vm1267 = vcmp.gt.f32.partialorder %v1259, 0.0
        %vm1268 = vcmp.gt.f32.partialorder %v1262, 0.0
        %v1269 = vmul.f32 %v1251, 0.01
        %v1270 = vmul.f32 %v1254, 0.01
        %v1271 = vmul.f32 %v1259, 0.01
        %v1272 = vmul.f32 %v1262, 0.01
        %v1273 = vsel %vm1265, %v1251, %v1269
        %v1274 = vsel %vm1266, %v1254, %v1270
        %v1275 = vsel %vm1267, %v1259, %v1271
        %v1276 = vsel %vm1268, %v1262, %v1272
        %v1277 = vmax.f32 %v1273, %v1274
        %v1278 = vmax.f32 %v1275, %v1276
        %v1279 = vmax.f32 %v1277, %v1278
        %v1280 = vrot.slane %v1279, 4
        %v1281 = vmax.f32 %v1279, %v1280
        %v1282 = vrot.slane %v1281, 2
        %v1283 = vmax.f32 %v1281, %v1282
        %v1284 = vrot.slane %v1283, 1
        %v1285 = vmax.f32 %v1283, %v1284
        %v1286 = vsub.f32 %v1273, %v1285
        %v1287 = vsub.f32 %v1274, %v1285
        %v1288 = vsub.f32 %v1275, %v1285
        %v1289 = vsub.f32 %v1276, %v1285
        %v1290 = vmul.f32 %v1286, 1.442695
        %v1291 = vpow.pop %v1290
        %v1292 = vmul.f32 %v1287, 1.442695
        %v1293 = vpow.pop %v1292
        %v1294 = vmul.f32 %v1288, 1.442695
        %v1295 = vpow.pop %v1294
        %v1296 = vmul.f32 %v1289, 1.442695
        %v1297 = vpow.pop %v1296
        %v1298 = vmul.f32 %v1135, %v1291
        %v1299 = vmul.f32 %v1138, %v1293
        %v1300 = vmul.f32 %v1143, %v1295
        %v1301 = vmul.f32 %v1146, %v1297
        %v1302 = vpack.c.bf16 %v1299, %v1298
        %v1303 = vpack.c.bf16 %v1301, %v1300
        %1304 = vst [vmem:[#allocation2] sm:$0xff] %v1302
        %1305 = vst [vmem:[#allocation2 + $0x10] sm:$0xff] %v1303
        %v1306 = vpack.c.bf16 %v1293, %v1291
        %v1307 = vpack.c.bf16 %v1297, %v1295
        %1308 = vst [vmem:[#allocation2 + $0x8] sm:$0xff] %v1306
        %1309 = vst [vmem:[#allocation2 + $0x18] sm:$0xff] %v1307
        %s1310 = scalar_lea.vmem %s592, 4
        %v1311 = vld [vmem:[%s1310] sm:$0xf]
        %v1312 = vld [vmem:[#allocation2] sm:$0xff]
        %v1313 = vld [vmem:[#allocation2 + $0x8] sm:$0xff]
        %v1314 = vld [vmem:[#allocation2 + $0x10] sm:$0xff]
        %v1315 = vld [vmem:[#allocation2 + $0x18] sm:$0xff]
        %v1317 = vsel %vm650, %v1311, 0
        %1319 = vmatprep.subr.bf16.mxu0 %v1313
        %1320 = vmatpush1.bf16.msra.mxu0 %v1312
        %1321 = vmatprep.subr.bf16.mxu0 %v1315
        %1322 = vmatpush1.bf16.msra.mxu0 %v1314
        %1323 = vmatprep.subr.bf16.mxu0 0
        %1324 = vmatpush1.bf16.msra.mxu0 0
        %1325 = vmatprep.subr.bf16.mxu0 0
        %1326 = vmatpush1.bf16.msra.mxu0 0
        %1327 = vmatprep.subr.bf16.mxu0 0
        %1328 = vmatpush1.bf16.msra.mxu0 0
        %1329 = vmatprep.subr.bf16.mxu0 0
        %1330 = vmatpush1.bf16.msra.mxu0 0
        %1331 = vmatprep.subr.bf16.mxu0 0
        %1332 = vmatpush1.bf16.msra.mxu0 0
        %1333 = vmatprep.subr.bf16.mxu0 0
        %1334 = vmatpush1.bf16.msra.mxu0 0
        %1335 = vmatprep.subr.bf16.mxu0 0
        %1336 = vmatpush1.bf16.msra.mxu0 0
        %1337 = vmatprep.subr.bf16.mxu0 0
        %1338 = vmatpush1.bf16.msra.mxu0 0
        %1339 = vmatprep.subr.bf16.mxu0 0
        %1340 = vmatpush1.bf16.msra.mxu0 0
        %1341 = vmatprep.subr.bf16.mxu0 0
        %1342 = vmatpush1.bf16.msra.mxu0 0
        %1343 = vmatprep.subr.bf16.mxu0 0
        %1344 = vmatpush1.bf16.msra.mxu0 0
        %1345 = vmatprep.subr.bf16.mxu0 0
        %1346 = vmatpush1.bf16.msra.mxu0 0
        %1347 = vmatprep.subr.bf16.mxu0 0
        %1348 = vmatpush1.bf16.msra.mxu0 0
        %1349 = vmatprep.subr.bf16.mxu0 0
        %1350 = vmatpush1.bf16.msra.mxu0 0
        %1351 = vmatprep.mubr.bf16.mxu0 0
        %1352 = vmatmul.mubr.bf16.gmra.mrb[0].mxu0 %v1317
        %v1353 = vpop.f32.mrb[0].mxu0
        %v1354 = vadd.f32 0.0, %v1353
        %v1355 = vpop.f32.mrb[0].mxu0
        %v1356 = vadd.f32 0.0, %v1355
        %v1357 = vpop.f32.mrb[0].mxu0
        %v1358 = vpop.f32.mrb[0].mxu0
        %1359 = vdwg.mxu0
        %vm1360 = vcmp.le.f32.partialorder %v1356, 0.0
        %v1361 = vsel %vm1360, 1.0, %v1356
        %v1362 = vrcp.pop %v1361
        %v1363 = vmul.f32 %v1354, %v1362
        %vm1364 = vcmp.gt.f32.partialorder %v1363, 0.0
        %v1365 = vmin.f32 %v1363, 0.0
        %v1366 = vmul.f32 %v1365, 1.442695
        %v1367 = vpow.pop %v1366
        %v1368 = vsub.f32 %v1367, 1.0
        %v1369 = vsel %vm1364, %v1363, %v1368
        %v1370 = vpack.c.bf16 %v1369, %v1369
        %v1371 = vld [vmem:[%s597] sm:$0xf]
        %v1372 = vld [vmem:[%s597 + $0x4] sm:$0xf]
        %v1373 = vld [vmem:[%s597 + $0x8] sm:$0xf]
        %v1374 = vld [vmem:[%s597 + $0xc] sm:$0xf]
        %v1375 = vld [vmem:[%s597 + $0x10] sm:$0xf]
        %v1376 = vld [vmem:[%s597 + $0x14] sm:$0xf]
        %v1377 = vld [vmem:[%s597 + $0x18] sm:$0xf]
        %v1378 = vld [vmem:[%s597 + $0x1c] sm:$0xf]
        %v1379 = vld [vmem:[%s597 + $0x20] sm:$0xf]
        %v1380 = vld [vmem:[%s597 + $0x24] sm:$0xf]
        %v1381 = vld [vmem:[%s597 + $0x28] sm:$0xf]
        %v1382 = vld [vmem:[%s597 + $0x2c] sm:$0xf]
        %v1383 = vld [vmem:[%s597 + $0x30] sm:$0xf]
        %v1384 = vld [vmem:[%s597 + $0x34] sm:$0xf]
        %v1385 = vld [vmem:[%s597 + $0x38] sm:$0xf]
        %v1386 = vld [vmem:[%s597 + $0x3c] sm:$0xf]
        %v1387 = vld [vmem:[%s600] sm:$0x1]
        %v1389 = vlaneseq
        %v1390 = vshrl.u32 %v1389, 7
        %v1391 = vsub.s32 0, %v1390
        %v1392 = vrot.slane %v1387, %v1391
        %v1410 = vunpack.c.l.b16 %v1371
        %v1411 = vunpack.c.l.b16 %v1372
        %v1412 = vunpack.c.l.b16 %v1373
        %v1413 = vunpack.c.l.b16 %v1374
        %v1414 = vunpack.c.l.b16 %v1375
        %v1415 = vunpack.c.l.b16 %v1376
        %v1416 = vunpack.c.l.b16 %v1377
        %v1417 = vunpack.c.l.b16 %v1378
        %v1418 = vunpack.c.l.b16 %v1379
        %v1419 = vunpack.c.l.b16 %v1380
        %v1420 = vunpack.c.l.b16 %v1381
        %v1421 = vunpack.c.l.b16 %v1382
        %v1422 = vunpack.c.l.b16 %v1383
        %v1423 = vunpack.c.l.b16 %v1384
        %v1424 = vunpack.c.l.b16 %v1385
        %v1425 = vunpack.c.l.b16 %v1386
        %v1426 = vpack.c.b16 %v1411, %v1410
        %v1427 = vpack.c.b16 %v1413, %v1412
        %v1428 = vpack.c.b16 %v1415, %v1414
        %v1429 = vpack.c.b16 %v1417, %v1416
        %v1430 = vpack.c.b16 %v1419, %v1418
        %v1431 = vpack.c.b16 %v1421, %v1420
        %v1432 = vpack.c.b16 %v1423, %v1422
        %v1433 = vpack.c.b16 %v1425, %v1424
        %1442 = vmatprep.subr.bf16.mxu0 0
        %1443 = vmatpush1.bf16.msra.mxu0 %v1426
        %1444 = vmatprep.subr.bf16.mxu0 0
        %1445 = vmatpush1.bf16.msra.mxu0 %v1427
        %1446 = vmatprep.subr.bf16.mxu0 0
        %1447 = vmatpush1.bf16.msra.mxu0 %v1428
        %1448 = vmatprep.subr.bf16.mxu0 0
        %1449 = vmatpush1.bf16.msra.mxu0 %v1429
        %1450 = vmatprep.subr.bf16.mxu0 0
        %1451 = vmatpush1.bf16.msra.mxu0 %v1430
        %1452 = vmatprep.subr.bf16.mxu0 0
        %1453 = vmatpush1.bf16.msra.mxu0 %v1431
        %1454 = vmatprep.subr.bf16.mxu0 0
        %1455 = vmatpush1.bf16.msra.mxu0 %v1432
        %1456 = vmatprep.subr.bf16.mxu0 0
        %1457 = vmatpush1.bf16.msra.mxu0 %v1433
        %1458 = vmatprep.subr.bf16.mxu0 0
        %1459 = vmatpush1.bf16.msra.mxu0 0
        %1460 = vmatprep.subr.bf16.mxu0 0
        %1461 = vmatpush1.bf16.msra.mxu0 0
        %1462 = vmatprep.subr.bf16.mxu0 0
        %1463 = vmatpush1.bf16.msra.mxu0 0
        %1464 = vmatprep.subr.bf16.mxu0 0
        %1465 = vmatpush1.bf16.msra.mxu0 0
        %1466 = vmatprep.subr.bf16.mxu0 0
        %1467 = vmatpush1.bf16.msra.mxu0 0
        %1468 = vmatprep.subr.bf16.mxu0 0
        %1469 = vmatpush1.bf16.msra.mxu0 0
        %1470 = vmatprep.subr.bf16.mxu0 0
        %1471 = vmatpush1.bf16.msra.mxu0 0
        %1472 = vmatprep.subr.bf16.mxu0 0
        %1473 = vmatpush1.bf16.msra.mxu0 0
        %1474 = vmatprep.mubr.bf16.mxu0 0
        %1475 = vmatmul.mubr.bf16.gmra.mrb[0].mxu0 %v1370
        %v1476 = vpop.f32.mrb[0].mxu0
        %v1477 = vadd.f32 %v1392, %v1476
        %v1478 = vpop.f32.mrb[0].mxu0
        %v1479 = vpop.f32.mrb[0].mxu0
        %v1480 = vpop.f32.mrb[0].mxu0
        %1481 = vdwg.mxu0
        %v1482 = vtanh.pop %v1477
        %v1483 = vsel %vm1038, %v1482, 0.0
        %v1484 = vrot.slane %v1483, 4
        %v1485 = vadd.f32 %v1483, %v1484
        %v1486 = vrot.slane %v1485, 2
        %v1487 = vadd.f32 %v1485, %v1486
        %v1488 = vrot.slane %v1487, 1
        %v1489 = vadd.f32 %v1487, %v1488
        %v1490 = vmul.f32 %v1489, %v1046
        %v1491 = vld [vmem:[%s603] sm:$0x1]
        %v1492 = vmul.f32 %v1490, %v1491
        %v1493 = vsel %vm1050, %v1492, 0.0
        %1494 = vadd.xlane.f32.xlu0 %v1493
        %v1495 = vpop.xlane.xlu0 %1494
        %v1496 = vmax.f32 %v1053, %v1495
        %v1497 = vsub.f32 %v1053, %v1496
        %v1498 = vmul.f32 %v1497, 1.442695
        %v1499 = vpow.pop %v1498
        %v1500 = vsub.f32 %v1495, %v1496
        %v1501 = vmul.f32 %v1500, 1.442695
        %v1502 = vpow.pop %v1501
        %v1503 = vadd.f32 %v1499, %v1502
        %v1504 = vrcp.pop %v1503
        %v1505 = vmul.f32 %v1499, %v1504
        %v1506 = vlaneseq
        %v1507 = vshrl.u32 %v1506, 7
        %v1508 = vsub.s32 0, %v1507
        %v1509 = vrot.slane %v1505, %v1508
        %v1510 = vmul.f32 %v1509, %v924
        %v1511 = vmul.f32 %v1502, %v1504
        %v1512 = vlaneseq
        %v1513 = vshrl.u32 %v1512, 7
        %v1514 = vsub.s32 0, %v1513
        %v1515 = vrot.slane %v1511, %v1514
        %v1516 = vmul.f32 %v1515, %v1369
        %v1517 = vadd.f32 %v1510, %v1516
        %1518 = vst [vmem:[%s583] sm:$0xff] %v1517
        %v1519 = vpack.c.bf16 %v1517, %v1517
        %v1520 = vld [vmem:[%s608] sm:$0xf]
        %v1521 = vld [vmem:[%s608 + $0x4] sm:$0xf]
        %v1522 = vld [vmem:[%s608 + $0x8] sm:$0xf]
        %v1523 = vld [vmem:[%s608 + $0xc] sm:$0xf]
        %v1524 = vld [vmem:[%s608 + $0x10] sm:$0xf]
        %v1525 = vld [vmem:[%s608 + $0x14] sm:$0xf]
        %v1526 = vld [vmem:[%s608 + $0x18] sm:$0xf]
        %v1527 = vld [vmem:[%s608 + $0x1c] sm:$0xf]
        %v1528 = vld [vmem:[%s608 + $0x20] sm:$0xf]
        %v1529 = vld [vmem:[%s608 + $0x24] sm:$0xf]
        %v1530 = vld [vmem:[%s608 + $0x28] sm:$0xf]
        %v1531 = vld [vmem:[%s608 + $0x2c] sm:$0xf]
        %v1532 = vld [vmem:[%s608 + $0x30] sm:$0xf]
        %v1533 = vld [vmem:[%s608 + $0x34] sm:$0xf]
        %v1534 = vld [vmem:[%s608 + $0x38] sm:$0xf]
        %v1535 = vld [vmem:[%s608 + $0x3c] sm:$0xf]
        %v1536 = vld [vmem:[%s611] sm:$0x1]
        %v1538 = vlaneseq
        %v1539 = vshrl.u32 %v1538, 7
        %v1540 = vsub.s32 0, %v1539
        %v1541 = vrot.slane %v1536, %v1540
        %v1559 = vunpack.c.l.b16 %v1520
        %v1560 = vunpack.c.l.b16 %v1521
        %v1561 = vunpack.c.l.b16 %v1522
        %v1562 = vunpack.c.l.b16 %v1523
        %v1563 = vunpack.c.l.b16 %v1524
        %v1564 = vunpack.c.l.b16 %v1525
        %v1565 = vunpack.c.l.b16 %v1526
        %v1566 = vunpack.c.l.b16 %v1527
        %v1567 = vunpack.c.l.b16 %v1528
        %v1568 = vunpack.c.l.b16 %v1529
        %v1569 = vunpack.c.l.b16 %v1530
        %v1570 = vunpack.c.l.b16 %v1531
        %v1571 = vunpack.c.l.b16 %v1532
        %v1572 = vunpack.c.l.b16 %v1533
        %v1573 = vunpack.c.l.b16 %v1534
        %v1574 = vunpack.c.l.b16 %v1535
        %v1575 = vpack.c.b16 %v1560, %v1559
        %v1576 = vpack.c.b16 %v1562, %v1561
        %v1577 = vpack.c.b16 %v1564, %v1563
        %v1578 = vpack.c.b16 %v1566, %v1565
        %v1579 = vpack.c.b16 %v1568, %v1567
        %v1580 = vpack.c.b16 %v1570, %v1569
        %v1581 = vpack.c.b16 %v1572, %v1571
        %v1582 = vpack.c.b16 %v1574, %v1573
        %1591 = vmatprep.subr.bf16.mxu0 0
        %1592 = vmatpush1.bf16.msra.mxu0 %v1575
        %1593 = vmatprep.subr.bf16.mxu0 0
        %1594 = vmatpush1.bf16.msra.mxu0 %v1576
        %1595 = vmatprep.subr.bf16.mxu0 0
        %1596 = vmatpush1.bf16.msra.mxu0 %v1577
        %1597 = vmatprep.subr.bf16.mxu0 0
        %1598 = vmatpush1.bf16.msra.mxu0 %v1578
        %1599 = vmatprep.subr.bf16.mxu0 0
        %1600 = vmatpush1.bf16.msra.mxu0 %v1579
        %1601 = vmatprep.subr.bf16.mxu0 0
        %1602 = vmatpush1.bf16.msra.mxu0 %v1580
        %1603 = vmatprep.subr.bf16.mxu0 0
        %1604 = vmatpush1.bf16.msra.mxu0 %v1581
        %1605 = vmatprep.subr.bf16.mxu0 0
        %1606 = vmatpush1.bf16.msra.mxu0 %v1582
        %1607 = vmatprep.subr.bf16.mxu0 0
        %1608 = vmatpush1.bf16.msra.mxu0 0
        %1609 = vmatprep.subr.bf16.mxu0 0
        %1610 = vmatpush1.bf16.msra.mxu0 0
        %1611 = vmatprep.subr.bf16.mxu0 0
        %1612 = vmatpush1.bf16.msra.mxu0 0
        %1613 = vmatprep.subr.bf16.mxu0 0
        %1614 = vmatpush1.bf16.msra.mxu0 0
        %1615 = vmatprep.subr.bf16.mxu0 0
        %1616 = vmatpush1.bf16.msra.mxu0 0
        %1617 = vmatprep.subr.bf16.mxu0 0
        %1618 = vmatpush1.bf16.msra.mxu0 0
        %1619 = vmatprep.subr.bf16.mxu0 0
        %1620 = vmatpush1.bf16.msra.mxu0 0
        %1621 = vmatprep.subr.bf16.mxu0 0
        %1622 = vmatpush1.bf16.msra.mxu0 0
        %1623 = vmatprep.mubr.bf16.mxu0 0
        %1624 = vmatmul.mubr.bf16.gmra.mrb[0].mxu0 %v1519
        %v1625 = vpop.f32.mrb[0].mxu0
        %v1626 = vadd.f32 %v1541, %v1625
        %v1627 = vpop.f32.mrb[0].mxu0
        %v1628 = vpop.f32.mrb[0].mxu0
        %v1629 = vpop.f32.mrb[0].mxu0
        %1630 = vdwg.mxu0
        %1631 = vst [vmem:[%s576] sm:$0xff] %v1626
        %s1632 = sand.u32 %s303, 1
        %s1633 = scalar_lea.sflag [#allocation5], %s1632
        %s1634 = sand.u32 %s303, 1
        %s1635 = smul.addr %s1634, 8
        %s1636 = scalar_lea.vmem [#allocation9], %s1635
        %s1637 = sand.u32 %s329, 1
        %s1638 = scalar_lea.sflag [#allocation11], %s1637
        %s1639 = sand.u32 %s329, 1
        %s1640 = smul.addr %s1639, 8
        %s1641 = scalar_lea.vmem [#allocation10], %s1640
        // Predicated region
        $region73: #{tpu_custom_call.1} parent=59 // pred_check
          %p1642 = pneg %p313
        $region74: #{tpu_custom_call.1} parent=59 // pred_check_branch
          %1644 = sbr.rel (%p1642) target = $region76
        $region75: #{tpu_custom_call.1} parent=59 // pred_region
          %s1646 = ssub.s32 128, 128
          %1647 = vsyncadd %s1633, %s1646
          %s1648 = smul.addr %s35, 128
          %s1649 = scalar_lea.hbm %s10, %s1648
          %s1651 = sshll.u32 %s1636, 4
          %s1652 = int_to_ptr.vmem [resolvable:$true] %s1651
          %1654 = dma.vmem_to_hbm [thread:$0]  %s1652, 128, %s1649, %s1633
        $region76: #{tpu_custom_call.1} parent=59 // pred_fallthru
          _
        // Predicated region
        $region77: #{tpu_custom_call.1} parent=59 // pred_check
          %p1655 = pneg %p339
        $region78: #{tpu_custom_call.1} parent=59 // pred_check_branch
          %1657 = sbr.rel (%p1655) target = $region80
        $region79: #{tpu_custom_call.1} parent=59 // pred_region
          %s1659 = ssub.s32 128, 128
          %1660 = vsyncadd %s1638, %s1659
          %s1661 = smul.addr %s35, 128
          %s1662 = scalar_lea.hbm %s11, %s1661
          %s1664 = sshll.u32 %s1641, 4
          %s1665 = int_to_ptr.vmem [resolvable:$true] %s1664
          %1667 = dma.vmem_to_hbm [thread:$0]  %s1665, 128, %s1662, %s1638
        $region80: #{tpu_custom_call.1} parent=59 // pred_fallthru
          _
      $region60: #{tpu_custom_call.1} parent=5 // pred_fallthru
        _
      %p1668 = scmp.le.s32.totalorder 2, %s30
      // Predicated region
      $region81: #{tpu_custom_call.1} parent=5 // pred_check
        %p1669 = pneg %p1668
      $region82: #{tpu_custom_call.1} parent=5 // pred_check_branch
        %1671 = sbr.rel (%p1669) target = $region84
      $region83: #{tpu_custom_call.1} parent=5 // pred_region
        %s1672 = ssub.s32 %s30, 2
        // Predicated region
        $region85: #{tpu_custom_call.1} parent=83 // pred_check
          %p1673 = pneg %p319
        $region86: #{tpu_custom_call.1} parent=83 // pred_check_branch
          %1675 = sbr.rel (%p1673) target = $region88
        $region87: #{tpu_custom_call.1} parent=83 // pred_region
          %s1676 = sand.u32 %s304, 1
          %s1677 = scalar_lea.sflag [#allocation5], %s1676
          %s1678 = sand.u32 %s304, 1
          %s1679 = smul.addr %s1678, 8
          %s1680 = scalar_lea.vmem [#allocation9], %s1679
          %1681 = dma.done %s1677, 128
        $region88: #{tpu_custom_call.1} parent=83 // pred_fallthru
          _
        // Predicated region
        $region89: #{tpu_custom_call.1} parent=83 // pred_check
          %p1682 = pneg %p345
        $region90: #{tpu_custom_call.1} parent=83 // pred_check_branch
          %1684 = sbr.rel (%p1682) target = $region92
        $region91: #{tpu_custom_call.1} parent=83 // pred_region
          %s1685 = sand.u32 %s330, 1
          %s1686 = scalar_lea.sflag [#allocation11], %s1685
          %s1687 = sand.u32 %s330, 1
          %s1688 = smul.addr %s1687, 8
          %s1689 = scalar_lea.vmem [#allocation10], %s1688
          %1690 = dma.done %s1686, 128
        $region92: #{tpu_custom_call.1} parent=83 // pred_fallthru
          _
      $region84: #{tpu_custom_call.1} parent=5 // pred_fallthru
        _
    $region6: #{tpu_custom_call.1} parent=1 // loop_footer
      %s34 = sadd.s32 1, %s30
    $region7: #{tpu_custom_call.1} parent=1 // loop_footer_branch
      %29 = sbr.rel target = $region3
    $region8: #{tpu_custom_call.1} parent=1 // loop_exit
      _
    %1691 = vsyncpa [#allocation4], 1
    %s1692 = scalar_lea.sflag [#allocation4], 1
    %1693 = vsyncpa %s1692, 1
    %1694 = vsyncpa [#allocation7], 1
    %s1695 = scalar_lea.sflag [#allocation7], 1
    %1696 = vsyncpa %s1695, 1
    %1697 = vsyncpa [#allocation5], 1
    %s1698 = scalar_lea.sflag [#allocation5], 1
    %1699 = vsyncpa %s1698, 1
    %1700 = vsyncpa [#allocation11], 1
    %s1701 = scalar_lea.sflag [#allocation11], 1
    %1702 = vsyncpa %s1701, 1

</llo_original>
